<compile_context>
chip_gen: v7x
topology: tpu7x:2x2x1
jax: 0.10.0
libtpu: 0.0.40
codegen_flags: <defaults>
</compile_context>

<pallas_src>
import math
import numpy as np
import jax
import jax.numpy as jnp
from jax import lax
from jax.experimental import pallas as pl
from jax.experimental.pallas import tpu as pltpu

STRIDE = 16
C_BASE = 512                         # base feature channels (nIn = 512*2 = 1024)
POOLED_H = 2                         # pooled_height in the 'ocr' branch
NH = 256                             # nh in the module
NCLASS = len('0123456789.') + 1      # 12
NCLASS_PAD = 128                     # lane-dense padded class dim (sliced back to 12)
NIN1 = C_BASE * POOLED_H             # 1024
ROI_BLOCK = 8                        # ROIs processed per grid step in the pooling kernel

VMEM_SPEC = pl.BlockSpec(memory_space=pltpu.MemorySpace.VMEM)
SMEM_SPEC = pl.BlockSpec(memory_space=pltpu.MemorySpace.SMEM)


# ----------------------- generic linear (matmul + bias) kernel ----------------------
def _linear_kernel(x_ref, w_ref, b_ref, o_ref):
    # bf16 MXU operands, f32 accumulation, f32 bias add.
    o_ref[...] = (jnp.dot(x_ref[...].astype(jnp.bfloat16), w_ref[...],
                          preferred_element_type=jnp.float32)
                  + b_ref[...]).astype(o_ref.dtype)


def linear_pallas(x, w_bf16, b, *, out_dtype=jnp.float32, tm=256):
    """x: (M, K) f32, w_bf16: (K, N) bf16, b: (N,) f32.  Tiled over M for large M."""
    M, K = x.shape
    N = w_bf16.shape[1]
    bias = b.reshape(1, N).astype(jnp.float32)
    if M <= tm:
        return pl.pallas_call(
            _linear_kernel,
            out_shape=jax.ShapeDtypeStruct((M, N), out_dtype),
            in_specs=[VMEM_SPEC, VMEM_SPEC, VMEM_SPEC],
            out_specs=VMEM_SPEC,
        )(x, w_bf16, bias)
    Mp = pl.cdiv(M, tm) * tm
    xp = jnp.pad(x, ((0, Mp - M), (0, 0))) if Mp != M else x
    out = pl.pallas_call(
        _linear_kernel,
        out_shape=jax.ShapeDtypeStruct((Mp, N), out_dtype),
        grid=(Mp // tm,),
        in_specs=[pl.BlockSpec((tm, K), lambda i: (i, 0)),
                  pl.BlockSpec((K, N), lambda i: (0, 0)),
                  pl.BlockSpec((1, N), lambda i: (0, 0))],
        out_specs=pl.BlockSpec((tm, N), lambda i: (i, 0)),
        compiler_params=pltpu.CompilerParams(dimension_semantics=("parallel",)),
    )(xp, w_bf16, bias)
    return out[:M] if Mp != M else out


# --------------------- RoI max pooling kernel (_RoIPooling, 'ocr') ------------------
def _round_half_away(v):
    # CUDA round(): half away from zero (correct for negative RPN coords too).
    return jnp.where(v >= 0, jnp.floor(v + 0.5), jnp.ceil(v - 0.5)).astype(jnp.int32)


def _make_roi_pool_kernel(PH, PW, RB, scale_h, scale_w, Hf, Wf, C):
    NEG = -jnp.inf

    def kernel(rois_ref, feat_ref, out_ref):
        feat = feat_ref[0]                                              # (Hf, Wf, C)
        hid = lax.broadcasted_iota(jnp.int32, (Hf, 1, 1), 0)
        wid = lax.broadcasted_iota(jnp.int32, (1, Wf), 1)
        pwi = lax.broadcasted_iota(jnp.int32, (PW, 1), 0)
        base = pl.program_id(0) * RB

        for j in range(RB):                                             # RB ROIs / grid step
            r = base + j
            x1 = rois_ref[r, 1]
            y1 = rois_ref[r, 2]
            x2 = rois_ref[r, 3]
            y2 = rois_ref[r, 4]
            roi_start_w = _round_half_away(x1 * scale_w)
            roi_end_w = _round_half_away(x2 * scale_w)
            roi_start_h = _round_half_away(y1 * scale_h)
            roi_end_h = _round_half_away(y2 * scale_h)
            roi_w = jnp.maximum(roi_end_w - roi_start_w + 1, 1)
            roi_h = jnp.maximum(roi_end_h - roi_start_h + 1, 1)
            bin_h = roi_h.astype(jnp.float32) / PH
            bin_w = roi_w.astype(jnp.float32) / PW

            # column-bin masks, vectorized over all pw, shared by every ph
            wstart = jnp.clip(jnp.floor(pwi * bin_w).astype(jnp.int32) + roi_start_w, 0, Wf)
            wend = jnp.clip(jnp.ceil((pwi + 1) * bin_w).astype(jnp.int32) + roi_start_w, 0, Wf)
            wmask = (wid >= wstart) & (wid < wend)                      # (PW, Wf)
            w_empty = wend <= wstart                                    # (PW, 1)

            parts = []
            for ph in range(PH):                                        # PH == 2, static
                hstart = jnp.clip(jnp.floor(ph * bin_h).astype(jnp.int32) + roi_start_h, 0, Hf)
                hend = jnp.clip(jnp.ceil((ph + 1) * bin_h).astype(jnp.int32) + roi_start_h, 0, Hf)
                hmask = (hid >= hstart) & (hid < hend)                  # (Hf,1,1)
                # hierarchical reduction: mask+max over H once, then over W per bin
                rowmax = jnp.max(jnp.where(hmask, feat, NEG), axis=0)   # (Wf, C)
                colmax = jnp.max(jnp.where(wmask[:, :, None], rowmax[None, :, :], NEG),
                                 axis=1)                                # (PW, C)
                empty = jnp.logical_or(hend <= hstart, w_empty)         # (PW, 1)
                parts.append(jnp.where(empty, 0.0, colmax))
            # time-major output row for this ROI; feature order = ph*C + c
            # (W_ih rows of the first LSTM are permuted accordingly in prepare_params)
            out_ref[:, j, :] = jnp.concatenate(parts, axis=1).astype(out_ref.dtype)
    return kernel


def roi_pool_pallas(rois, base_feat, PH, PW, scale_h, scale_w, RB=ROI_BLOCK):
    # rois: (n, 5) [batch_idx, x1, y1, x2, y2] with n % RB == 0
    # base_feat: (1, Hf, Wf, C) NHWC f32
    # returns (PW, n, PH*C) time-major RNN input (no XLA transpose needed afterwards).
    n = rois.shape[0]
    _, Hf, Wf, C = base_feat.shape
    kernel = _make_roi_pool_kernel(PH, PW, RB, scale_h, scale_w, Hf, Wf, C)
    return pl.pallas_call(
        kernel,
        out_shape=jax.ShapeDtypeStruct((PW, n, PH * C), jnp.float32),
        grid=(n // RB,),
        in_specs=[SMEM_SPEC,
                  pl.BlockSpec((1, Hf, Wf, C), lambda g: (0, 0, 0, 0))],
        out_specs=pl.BlockSpec((PW, RB, PH * C), lambda g: (0, g, 0)),
        compiler_params=pltpu.CompilerParams(dimension_semantics=("parallel",)),
    )(rois.astype(jnp.float32), base_feat)


# --------------------- fused BidirectionalLSTM + embedding kernel -------------------
def _bilstm_emb_kernel(x_ref, wih_ref, u_ref, b_ref, wemb_ref, bemb_ref, out_ref, rec_ref):
    # x_ref:    (T, B, F)    f32   input sequence
    # wih_ref:  (F, 8H)      bf16  [W_ih_fwd | W_ih_bwd]
    # u_ref:    (2H, 8H)     bf16  blockdiag(W_hh_fwd, W_hh_bwd)
    # b_ref:    (1, 8H)      f32   [b_fwd | b_bwd]  (b_ih + b_hh combined)
    # wemb_ref: (2H, Nout)   bf16  embedding weight (Nout lane-padded)
    # bemb_ref: (1, Nout)    f32
    # out_ref:  (T, B, Nout)       embedding(LSTM output)
    # rec_ref:  (T*B, 2H)    f32   VMEM scratch holding the bidirectional LSTM output
    T, B, F = x_ref.shape
    H2, _ = u_ref.shape
    H = H2 // 2
    H4 = 4 * H
    NOutP = wemb_ref.shape[1]

    # Hoisted input projection: one well-shaped MXU matmul for both directions, all T.
    x2d = x_ref[...].reshape(T * B, F).astype(jnp.bfloat16)
    xg = jnp.dot(x2d, wih_ref[...], preferred_element_type=jnp.float32) + b_ref[...]  # (T*B, 8H)

    def cell(gates, c_prev):                      # PyTorch gate order: i, f, g, o (f32 math)
        i = jax.nn.sigmoid(gates[:, 0:H])
        f = jax.nn.sigmoid(gates[:, H:2 * H])
        g = jnp.tanh(gates[:, 2 * H:3 * H])
        o = jax.nn.sigmoid(gates[:, 3 * H:4 * H])
        c_new = f * c_prev + i * g
        return o * jnp.tanh(c_new), c_new

    u = u_ref[...]
    h_f = jnp.zeros((B, H), jnp.float32)
    c_f = jnp.zeros((B, H), jnp.float32)
    h_b = jnp.zeros((B, H), jnp.float32)
    c_b = jnp.zeros((B, H), jnp.float32)
    for s in range(T):                            # T is small & static -> unrolled
        tb = T - 1 - s
        # one block-diagonal recurrent matmul drives both directions
        hcat = jnp.concatenate([h_f, h_b], axis=1).astype(jnp.bfloat16)          # (B, 2H)
        rec = jnp.dot(hcat, u, preferred_element_type=jnp.float32)               # (B, 8H)
        gf = xg[s * B:(s + 1) * B, 0:H4] + rec[:, 0:H4]
        gb = xg[tb * B:(tb + 1) * B, H4:2 * H4] + rec[:, H4:2 * H4]
        h_f, c_f = cell(gf, c_f)
        h_b, c_b = cell(gb, c_b)
        rec_ref[s * B:(s + 1) * B, 0:H] = h_f
        rec_ref[tb * B:(tb + 1) * B, H:2 * H] = h_b

    # Fused embedding Linear on the (T*B, 2H) LSTM output while it is still in VMEM.
    emb = (jnp.dot(rec_ref[...].astype(jnp.bfloat16), wemb_ref[...],
                   preferred_element_type=jnp.float32) + bemb_ref[...])
    out_ref[...] = emb.reshape(T, B, NOutP).astype(out_ref.dtype)


def bilstm_emb_pallas(x, p, *, out_dtype=jnp.float32):
    T, B, _ = x.shape
    H2 = p['u_blk'].shape[0]
    NOutP = p['wemb'].shape[1]
    return pl.pallas_call(
        _bilstm_emb_kernel,
        out_shape=jax.ShapeDtypeStruct((T, B, NOutP), out_dtype),
        in_specs=[VMEM_SPEC] * 6,
        out_specs=VMEM_SPEC,
        scratch_shapes=[pltpu.VMEM((T * B, H2), jnp.float32)],
    )(x, p['wih_all'], p['u_blk'], p['b_all'], p['wemb'], p['bemb'])


# ---------------------------------- parameters --------------------------------------
def init_params(key):
    """Raw, PyTorch-layout weights (weight_ih/hh transposed; b = b_ih + b_hh)."""
    def normal(k, shape, scale):
        return (scale * jax.random.normal(k, shape)).astype(jnp.float32)

    ks = jax.random.split(key, 8)

    def lstm_raw(k, n_in, n_h):
        kk = jax.random.split(k, 6)
        s = 1.0 / math.sqrt(n_h)
        return dict(
            wih_f=normal(kk[0], (n_in, 4 * n_h), s),
            whh_f=normal(kk[1], (n_h, 4 * n_h), s),
            b_f=normal(kk[2], (1, 4 * n_h), s),
            wih_b=normal(kk[3], (n_in, 4 * n_h), s),
            whh_b=normal(kk[4], (n_h, 4 * n_h), s),
            b_b=normal(kk[5], (1, 4 * n_h), s),
        )

    return dict(
        patch_w=normal(ks[0], (STRIDE * STRIDE * 3, C_BASE), 0.02),
        patch_b=jnp.zeros((C_BASE,), jnp.float32),
        lstm1=lstm_raw(ks[1], NIN1, NH),
        emb1_w=normal(ks[2], (2 * NH, NH), 0.02),
        emb1_b=jnp.zeros((NH,), jnp.float32),
        lstm2=lstm_raw(ks[3], NH, NH),
        emb2_w=normal(ks[4], (2 * NH, NCLASS), 0.02),
        emb2_b=jnp.zeros((NCLASS,), jnp.float32),
    )


def prepare_params(raw):
    """One-time fusion of PyTorch-layout weights into kernel layouts:
    bf16 MXU operands, concatenated fwd/bwd input projections, block-diagonal
    recurrent weights, lane-padded class embedding, and the W_ih row permutation
    that matches the RoI-pool kernel's (ph, c) feature ordering."""
    def prep_block(lp, emb_w, emb_b, permute_input, nout_pad):
        H = lp['whh_f'].shape[0]
        wih_all = jnp.concatenate([lp['wih_f'], lp['wih_b']], axis=1)            # (nIn, 8H)
        if permute_input:
            # PyTorch's pooled_feat.view(b, C*PH, W) orders features (c, ph); the
            # pooling kernel emits (ph, c): permute W_ih rows so results match.
            nin = wih_all.shape[0]
            wih_all = (wih_all.reshape(C_BASE, POOLED_H, 8 * H)
                       .transpose(1, 0, 2).reshape(nin, 8 * H))
        u_blk = jnp.zeros((2 * H, 8 * H), jnp.float32)
        u_blk = u_blk.at[:H, :4 * H].set(lp['whh_f'])
        u_blk = u_blk.at[H:, 4 * H:].set(lp['whh_b'])
        b_all = jnp.concatenate([lp['b_f'], lp['b_b']], axis=1)                  # (1, 8H)
        wemb = emb_w
        bemb = emb_b.reshape(1, -1)
        if wemb.shape[1] < nout_pad:            # lane-dense output store
            wemb = jnp.pad(wemb, ((0, 0), (0, nout_pad - wemb.shape[1])))
            bemb = jnp.pad(bemb, ((0, 0), (0, nout_pad - bemb.shape[1])))
        return dict(wih_all=wih_all.astype(jnp.bfloat16),
                    u_blk=u_blk.astype(jnp.bfloat16),
                    b_all=b_all.astype(jnp.float32),
                    wemb=wemb.astype(jnp.bfloat16),
                    bemb=bemb.astype(jnp.float32))

    return dict(
        patch_w=raw['patch_w'].astype(jnp.bfloat16),
        patch_b=raw['patch_b'].astype(jnp.float32),
        blk1=prep_block(raw['lstm1'], raw['emb1_w'], raw['emb1_b'],
                        permute_input=True, nout_pad=NH),
        blk2=prep_block(raw['lstm2'], raw['emb2_w'], raw['emb2_b'],
                        permute_input=False, nout_pad=NCLASS_PAD),
    )


# ------------------------------------ forward ---------------------------------------
def compute_pooled_width(rois_np, pooled_height=POOLED_H):
    # Host-side, BEFORE dispatch, so T is static for all kernels (no mid-forward device
    # sync / retrace).  TODO(synk): bucket pooled_w to a static set in serving.
    r = np.asarray(rois_np).reshape(-1, 5)
    w = (r[:, 3] - r[:, 1]) / 16.0
    h = np.maximum((r[:, 4] - r[:, 2]) / 16.0, 1e-3)    # guard degenerate ROIs
    return int(math.ceil(pooled_height * float(np.max(w / h))))


def faster_rcnn_ocr_forward(im_data, im_info, gt_boxes, rois, pooled_w, params):
    del im_info, gt_boxes  # consumed by RPN / proposal-target (external, see TODOs)

    # --- RCNN_base stand-in: stride-16 patch embedding (tiled Pallas matmul) ---
    B, Cin, Him, Wim = im_data.shape
    Hf, Wf = Him // STRIDE, Wim // STRIDE
    x = jnp.transpose(im_data, (0, 2, 3, 1))                               # NCHW -> NHWC
    x = x.reshape(B, Hf, STRIDE, Wf, STRIDE, Cin)
    x = x.transpose(0, 1, 3, 2, 4, 5).reshape(B * Hf * Wf, STRIDE * STRIDE * Cin)
    base = linear_pallas(x, params['patch_w'], params['patch_b'])
    base_feat = base.reshape(B, Hf, Wf, C_BASE)                            # NHWC f32

    # --- POOLING_MODE == 'ocr': RoI max pooling, emitted time-major for the RNN ---
    rois_flat = rois.reshape(-1, 5)
    n = rois_flat.shape[0]
    n_pad = ((n + ROI_BLOCK - 1) // ROI_BLOCK) * ROI_BLOCK
    if n_pad != n:
        rois_flat = jnp.concatenate(
            [rois_flat, jnp.tile(rois_flat[-1:], (n_pad - n, 1))], axis=0)

    rnn_in = roi_pool_pallas(rois_flat, base_feat, POOLED_H, pooled_w,
                             1.0 / 16.0, 1.0 / 16.0)                       # (T, n_pad, 1024)

    # --- OCR head: BidirectionalLSTM(1024,256,256) -> BidirectionalLSTM(256,256,12) ---
    rec1 = bilstm_emb_pallas(rnn_in, params['blk1'], out_dtype=jnp.float32)   # (T, n_pad, 256)
    preds = bilstm_emb_pallas(rec1, params['blk2'], out_dtype=jnp.float32)    # (T, n_pad, 128)
    return preds[:, :n, :NCLASS]                                              # eval-mode output


# -------------------------------------- main -----------------------------------------
if __name__ == "__main__":
    key = jax.random.PRNGKey(0)
    k_im, k_p = jax.random.split(key)

    # image: 1 x 3 x 128 x 128  -> base feature 1 x 8 x 8 x 512
    im_data = jax.random.normal(k_im, (1, 3, 128, 128), dtype=jnp.float32)
    im_info = jnp.array([[128.0, 128.0, 1.0]], dtype=jnp.float32)

    # deterministic rois / gt_boxes: [batch_idx, x1, y1, x2, y2], wider than tall (text-like)
    n_rois = 8
    rois_np = np.zeros((1, n_rois, 5), dtype=np.float32)
    for i in range(n_rois):
        x1 = 4.0 + 6.0 * i
        w = 40.0 + 4.0 * i
        y1 = 10.0 + 6.0 * (i % 4)
        h = 24.0
        rois_np[0, i] = [0.0, x1, y1, x1 + w, y1 + h]
    rois = jnp.asarray(rois_np)
    gt_boxes = rois  # stand-in; consumed only by the external RPN / proposal-target layers

    # text / text_length only feed the training CTC branch (not implemented)
    text = jnp.ones((1, n_rois), dtype=jnp.int32)
    text_length = jnp.full((1, n_rois), 3, dtype=jnp.int32)

    params = prepare_params(init_params(k_p))

    # T is static: pooled_width derived on host before dispatch (no mid-forward sync).
    pooled_w = compute_pooled_width(rois_np)

    preds = faster_rcnn_ocr_forward(im_data, im_info, gt_boxes, rois, pooled_w, params)
    preds = jax.block_until_ready(preds)

    assert preds.ndim == 3 and preds.shape[1] == n_rois and preds.shape[2] == NCLASS
    assert bool(jnp.all(jnp.isfinite(preds)))
    print("KERNEL_OK")
</pallas_src>

<mosaic_0001>
module attributes {stable_mosaic.version = 11 : i64} {
  func.func @_linear_kernel(%arg0: memref<64x768xf32, #tpu.memory_space<vmem>>, %arg1: memref<768x512xbf16, #tpu.memory_space<vmem>>, %arg2: memref<1x512xf32, #tpu.memory_space<vmem>>, %arg3: memref<64x512xf32, #tpu.memory_space<vmem>>) attributes {dimension_semantics = [], scalar_prefetch = 0 : i64, scratch_operands = 0 : i64, tpu.core_type = #tpu.core_type<tc>} {
    %c0 = arith.constant 0 : index
    %c0_0 = arith.constant 0 : index
    %0 = vector.load %arg0[%c0, %c0_0] : memref<64x768xf32, #tpu.memory_space<vmem>>, vector<64x768xf32>
    %1 = arith.truncf %0 : vector<64x768xf32> to vector<64x768xbf16>
    %c0_1 = arith.constant 0 : index
    %c0_2 = arith.constant 0 : index
    %2 = vector.load %arg1[%c0_1, %c0_2] : memref<768x512xbf16, #tpu.memory_space<vmem>>, vector<768x512xbf16>
    %cst = arith.constant dense<0.000000e+00> : vector<64x512xf32>
    %3 = tpu.matmul %1, %2, %cst {dimension_numbers = #tpu.dot_dimension_numbers<[1], [0], [0], [1], [0, 0, 1, 1], [], []>} : vector<64x768xbf16>, vector<768x512xbf16>, vector<64x512xf32> -> vector<64x512xf32>
    %c0_3 = arith.constant 0 : index
    %c0_4 = arith.constant 0 : index
    %4 = vector.load %arg2[%c0_3, %c0_4] : memref<1x512xf32, #tpu.memory_space<vmem>>, vector<1x512xf32>
    %5 = vector.broadcast %4 : vector<1x512xf32> to vector<64x512xf32>
    %6 = arith.addf %3, %5 : vector<64x512xf32>
    %c0_5 = arith.constant 0 : index
    %c0_6 = arith.constant 0 : index
    %7 = vector.load %arg3[%c0_5, %c0_6] : memref<64x512xf32, #tpu.memory_space<vmem>>, vector<64x512xf32>
    tpu.vector_store %arg3[%c0_5, %c0_6], %6 {strides = array<i32>} : memref<64x512xf32, #tpu.memory_space<vmem>>, vector<64x512xf32>,
    return
  }
}

</mosaic_0001>

<llo_original>
// kernel: tpu_custom_call.1
$region0: #{tpu_custom_call.1}
  #allocation0 [shape = 'u32[]', space=smem, size = 0x4, offset = 0x4, fixed_abs, tag = 'smem constant byte address 0x4 - core index']
  #allocation1 [shape = 'u32[144,128]{1,0:T(1,128)}', space=vmem, size = 0x12000, scoped, tag = 'internal scratch']
  %s0 = inlined_call_operand.hbm [shape: f32[64,768], index: 0, kind: input, shape index: {}]
  %s1 = inlined_call_operand.hbm [shape: bf16[768,512], index: 1, kind: input, shape index: {}]
  %s2 = inlined_call_operand.vmem [shape: f32[1,512], index: 2, kind: input, shape index: {}]
  %s3 = inlined_call_operand.hbm [shape: f32[64,512], index: 3, kind: output, shape index: {}]
  %s4 = sld [smem:[#allocation0]]
  $region30: #{tpu_custom_call.1} parent=0
    _
  %s6 = ssub.s32 1, %s4
  %s7 = scalar_select 0, %s6, %s4
  $region1: #{tpu_custom_call.1} parent=0
    #allocation2 [shape = 'u8[196608]{0}', space=vmem, size = 0x30000, scoped, tag = 'input window, operand 0, single buffered']
    #allocation3 [shape = 's32[1]{0}', space=sflag, size = 0x4, scoped, tag = 'scoped memory for tpu_custom_call.1']
    #allocation4 [shape = 's32[1]{0}', space=sflag, size = 0x4, scoped, tag = 'scoped memory for tpu_custom_call.1']
    #allocation5 [shape = 'u8[786432]{0}', space=vmem, size = 0xc0000, scoped, tag = 'input window, operand 1, single buffered']
    #allocation6 [shape = 's32[1]{0}', space=sflag, size = 0x4, scoped, tag = 'scoped memory for tpu_custom_call.1']
    #allocation7 [shape = 'u8[131072]{0}', space=vmem, size = 0x20000, scoped, tag = 'output window, operand 0, single buffered']
    %8 = vsyncpa [#allocation3], 0
    %9 = vsyncpa [#allocation6], 0
    %10 = vsyncpa [#allocation4], 0
    // Predicated region
    $region2: #{tpu_custom_call.1} parent=1 // pred_check
      _
    $region3: #{tpu_custom_call.1} parent=1 // pred_check_branch
      %12 = sbr.rel (0) target = $region5
    $region4: #{tpu_custom_call.1} parent=1 // pred_region
      %s14 = ssub.s32 6144, 6144
      %15 = vsyncadd [#allocation3], %s14
      %s16 = sshll.u32 [#allocation2], 4
      %s17 = int_to_ptr.vmem [resolvable:$true] %s16
      %22 = dma.hbm_to_vmem [thread:$0]  %s0, 6144, %s17, [#allocation3], 768, 768, 48
    $region5: #{tpu_custom_call.1} parent=1 // pred_fallthru
      _
    // Predicated region
    $region6: #{tpu_custom_call.1} parent=1 // pred_check
      _
    $region7: #{tpu_custom_call.1} parent=1 // pred_check_branch
      %24 = sbr.rel (0) target = $region9
    $region8: #{tpu_custom_call.1} parent=1 // pred_region
      %s26 = ssub.s32 24576, 24576
      %27 = vsyncadd [#allocation6], %s26
      %s28 = sshll.u32 [#allocation5], 4
      %s29 = int_to_ptr.vmem [resolvable:$true] %s28
      %34 = dma.hbm_to_vmem [thread:$0]  %s1, 24576, %s29, [#allocation6], 256, 256, 16
    $region9: #{tpu_custom_call.1} parent=1 // pred_fallthru
      _
    // Predicated region
    $region10: #{tpu_custom_call.1} parent=1 // pred_check
      _
    $region11: #{tpu_custom_call.1} parent=1 // pred_check_branch
      %36 = sbr.rel (0) target = $region13
    $region12: #{tpu_custom_call.1} parent=1 // pred_region
      _
    $region13: #{tpu_custom_call.1} parent=1 // pred_fallthru
      _
    // Predicated region
    $region14: #{tpu_custom_call.1} parent=1 // pred_check
      _
    $region15: #{tpu_custom_call.1} parent=1 // pred_check_branch
      %38 = sbr.rel (0) target = $region17
    $region16: #{tpu_custom_call.1} parent=1 // pred_region
      %39 = dma.done [#allocation3], 6144
    $region17: #{tpu_custom_call.1} parent=1 // pred_fallthru
      _
    // Predicated region
    $region18: #{tpu_custom_call.1} parent=1 // pred_check
      _
    $region19: #{tpu_custom_call.1} parent=1 // pred_check_branch
      %41 = sbr.rel (0) target = $region21
    $region20: #{tpu_custom_call.1} parent=1 // pred_region
      %42 = dma.done [#allocation6], 24576
    $region21: #{tpu_custom_call.1} parent=1 // pred_fallthru
      _
    %v43 = vld [vmem:[#allocation2] sm:$0xff]
    %v44 = vld [vmem:[#allocation2 + $0x8] sm:$0xff]
    %v45 = vld [vmem:[#allocation2 + $0x10] sm:$0xff]
    %v46 = vld [vmem:[#allocation2 + $0x18] sm:$0xff]
    %v47 = vld [vmem:[#allocation2 + $0x20] sm:$0xff]
    %v48 = vld [vmem:[#allocation2 + $0x28] sm:$0xff]
    %v49 = vld [vmem:[#allocation2 + $0x30] sm:$0xff]
    %v50 = vld [vmem:[#allocation2 + $0x38] sm:$0xff]
    %v51 = vld [vmem:[#allocation2 + $0x40] sm:$0xff]
    %v52 = vld [vmem:[#allocation2 + $0x48] sm:$0xff]
    %v53 = vld [vmem:[#allocation2 + $0x50] sm:$0xff]
    %v54 = vld [vmem:[#allocation2 + $0x58] sm:$0xff]
    %v55 = vld [vmem:[#allocation2 + $0x60] sm:$0xff]
    %v56 = vld [vmem:[#allocation2 + $0x68] sm:$0xff]
    %v57 = vld [vmem:[#allocation2 + $0x70] sm:$0xff]
    %v58 = vld [vmem:[#allocation2 + $0x78] sm:$0xff]
    %v59 = vld [vmem:[#allocation2 + $0x80] sm:$0xff]
    %v60 = vld [vmem:[#allocation2 + $0x88] sm:$0xff]
    %v61 = vld [vmem:[#allocation2 + $0x90] sm:$0xff]
    %v62 = vld [vmem:[#allocation2 + $0x98] sm:$0xff]
    %v63 = vld [vmem:[#allocation2 + $0xa0] sm:$0xff]
    %v64 = vld [vmem:[#allocation2 + $0xa8] sm:$0xff]
    %v65 = vld [vmem:[#allocation2 + $0xb0] sm:$0xff]
    %v66 = vld [vmem:[#allocation2 + $0xb8] sm:$0xff]
    %v67 = vld [vmem:[#allocation2 + $0xc0] sm:$0xff]
    %v68 = vld [vmem:[#allocation2 + $0xc8] sm:$0xff]
    %v69 = vld [vmem:[#allocation2 + $0xd0] sm:$0xff]
    %v70 = vld [vmem:[#allocation2 + $0xd8] sm:$0xff]
    %v71 = vld [vmem:[#allocation2 + $0xe0] sm:$0xff]
    %v72 = vld [vmem:[#allocation2 + $0xe8] sm:$0xff]
    %v73 = vld [vmem:[#allocation2 + $0xf0] sm:$0xff]
    %v74 = vld [vmem:[#allocation2 + $0xf8] sm:$0xff]
    %v75 = vld [vmem:[#allocation2 + $0x100] sm:$0xff]
    %v76 = vld [vmem:[#allocation2 + $0x108] sm:$0xff]
    %v77 = vld [vmem:[#allocation2 + $0x110] sm:$0xff]
    %v78 = vld [vmem:[#allocation2 + $0x118] sm:$0xff]
    %v79 = vld [vmem:[#allocation2 + $0x120] sm:$0xff]
    %v80 = vld [vmem:[#allocation2 + $0x128] sm:$0xff]
    %v81 = vld [vmem:[#allocation2 + $0x130] sm:$0xff]
    %v82 = vld [vmem:[#allocation2 + $0x138] sm:$0xff]
    %v83 = vld [vmem:[#allocation2 + $0x140] sm:$0xff]
    %v84 = vld [vmem:[#allocation2 + $0x148] sm:$0xff]
    %v85 = vld [vmem:[#allocation2 + $0x150] sm:$0xff]
    %v86 = vld [vmem:[#allocation2 + $0x158] sm:$0xff]
    %v87 = vld [vmem:[#allocation2 + $0x160] sm:$0xff]
    %v88 = vld [vmem:[#allocation2 + $0x168] sm:$0xff]
    %v89 = vld [vmem:[#allocation2 + $0x170] sm:$0xff]
    %v90 = vld [vmem:[#allocation2 + $0x178] sm:$0xff]
    %v91 = vpack.c.bf16 %v49, %v43
    %v92 = vpack.c.bf16 %v50, %v44
    %v93 = vpack.c.bf16 %v51, %v45
    %v94 = vpack.c.bf16 %v52, %v46
    %v95 = vpack.c.bf16 %v53, %v47
    %v96 = vpack.c.bf16 %v54, %v48
    %v97 = vpack.c.bf16 %v61, %v55
    %v98 = vpack.c.bf16 %v62, %v56
    %v99 = vpack.c.bf16 %v63, %v57
    %v100 = vpack.c.bf16 %v64, %v58
    %v101 = vpack.c.bf16 %v65, %v59
    %v102 = vpack.c.bf16 %v66, %v60
    %v103 = vpack.c.bf16 %v73, %v67
    %v104 = vpack.c.bf16 %v74, %v68
    %v105 = vpack.c.bf16 %v75, %v69
    %v106 = vpack.c.bf16 %v76, %v70
    %v107 = vpack.c.bf16 %v77, %v71
    %v108 = vpack.c.bf16 %v78, %v72
    %v109 = vpack.c.bf16 %v85, %v79
    %v110 = vpack.c.bf16 %v86, %v80
    %v111 = vpack.c.bf16 %v87, %v81
    %v112 = vpack.c.bf16 %v88, %v82
    %v113 = vpack.c.bf16 %v89, %v83
    %v114 = vpack.c.bf16 %v90, %v84
    %v115 = vld [vmem:[#allocation5] sm:$0xff]
    %v116 = vld [vmem:[#allocation5 + $0x8] sm:$0xff]
    %v117 = vld [vmem:[#allocation5 + $0x10] sm:$0xff]
    %v118 = vld [vmem:[#allocation5 + $0x18] sm:$0xff]
    %v119 = vld [vmem:[#allocation5 + $0x20] sm:$0xff]
    %v120 = vld [vmem:[#allocation5 + $0x28] sm:$0xff]
    %v121 = vld [vmem:[#allocation5 + $0x30] sm:$0xff]
    %v122 = vld [vmem:[#allocation5 + $0x38] sm:$0xff]
    %v123 = vld [vmem:[#allocation5 + $0x40] sm:$0xff]
    %v124 = vld [vmem:[#allocation5 + $0x48] sm:$0xff]
    %v125 = vld [vmem:[#allocation5 + $0x50] sm:$0xff]
    %v126 = vld [vmem:[#allocation5 + $0x58] sm:$0xff]
    %v127 = vld [vmem:[#allocation5 + $0x60] sm:$0xff]
    %v128 = vld [vmem:[#allocation5 + $0x68] sm:$0xff]
    %v129 = vld [vmem:[#allocation5 + $0x70] sm:$0xff]
    %v130 = vld [vmem:[#allocation5 + $0x78] sm:$0xff]
    %v131 = vld [vmem:[#allocation5 + $0x80] sm:$0xff]
    %v132 = vld [vmem:[#allocation5 + $0x88] sm:$0xff]
    %v133 = vld [vmem:[#allocation5 + $0x90] sm:$0xff]
    %v134 = vld [vmem:[#allocation5 + $0x98] sm:$0xff]
    %v135 = vld [vmem:[#allocation5 + $0xa0] sm:$0xff]
    %v136 = vld [vmem:[#allocation5 + $0xa8] sm:$0xff]
    %v137 = vld [vmem:[#allocation5 + $0xb0] sm:$0xff]
    %v138 = vld [vmem:[#allocation5 + $0xb8] sm:$0xff]
    %v139 = vld [vmem:[#allocation5 + $0xc0] sm:$0xff]
    %v140 = vld [vmem:[#allocation5 + $0xc8] sm:$0xff]
    %v141 = vld [vmem:[#allocation5 + $0xd0] sm:$0xff]
    %v142 = vld [vmem:[#allocation5 + $0xd8] sm:$0xff]
    %v143 = vld [vmem:[#allocation5 + $0xe0] sm:$0xff]
    %v144 = vld [vmem:[#allocation5 + $0xe8] sm:$0xff]
    %v145 = vld [vmem:[#allocation5 + $0xf0] sm:$0xff]
    %v146 = vld [vmem:[#allocation5 + $0xf8] sm:$0xff]
    %v147 = vld [vmem:[#allocation5 + $0x100] sm:$0xff]
    %v148 = vld [vmem:[#allocation5 + $0x108] sm:$0xff]
    %v149 = vld [vmem:[#allocation5 + $0x110] sm:$0xff]
    %v150 = vld [vmem:[#allocation5 + $0x118] sm:$0xff]
    %v151 = vld [vmem:[#allocation5 + $0x120] sm:$0xff]
    %v152 = vld [vmem:[#allocation5 + $0x128] sm:$0xff]
    %v153 = vld [vmem:[#allocation5 + $0x130] sm:$0xff]
    %v154 = vld [vmem:[#allocation5 + $0x138] sm:$0xff]
    %v155 = vld [vmem:[#allocation5 + $0x140] sm:$0xff]
    %v156 = vld [vmem:[#allocation5 + $0x148] sm:$0xff]
    %v157 = vld [vmem:[#allocation5 + $0x150] sm:$0xff]
    %v158 = vld [vmem:[#allocation5 + $0x158] sm:$0xff]
    %v159 = vld [vmem:[#allocation5 + $0x160] sm:$0xff]
    %v160 = vld [vmem:[#allocation5 + $0x168] sm:$0xff]
    %v161 = vld [vmem:[#allocation5 + $0x170] sm:$0xff]
    %v162 = vld [vmem:[#allocation5 + $0x178] sm:$0xff]
    %v163 = vld [vmem:[#allocation5 + $0x180] sm:$0xff]
    %v164 = vld [vmem:[#allocation5 + $0x188] sm:$0xff]
    %v165 = vld [vmem:[#allocation5 + $0x190] sm:$0xff]
    %v166 = vld [vmem:[#allocation5 + $0x198] sm:$0xff]
    %v167 = vld [vmem:[#allocation5 + $0x1a0] sm:$0xff]
    %v168 = vld [vmem:[#allocation5 + $0x1a8] sm:$0xff]
    %v169 = vld [vmem:[#allocation5 + $0x1b0] sm:$0xff]
    %v170 = vld [vmem:[#allocation5 + $0x1b8] sm:$0xff]
    %v171 = vld [vmem:[#allocation5 + $0x1c0] sm:$0xff]
    %v172 = vld [vmem:[#allocation5 + $0x1c8] sm:$0xff]
    %v173 = vld [vmem:[#allocation5 + $0x1d0] sm:$0xff]
    %v174 = vld [vmem:[#allocation5 + $0x1d8] sm:$0xff]
    %v175 = vld [vmem:[#allocation5 + $0x1e0] sm:$0xff]
    %v176 = vld [vmem:[#allocation5 + $0x1e8] sm:$0xff]
    %v177 = vld [vmem:[#allocation5 + $0x1f0] sm:$0xff]
    %v178 = vld [vmem:[#allocation5 + $0x1f8] sm:$0xff]
    %v179 = vld [vmem:[#allocation5 + $0x200] sm:$0xff]
    %v180 = vld [vmem:[#allocation5 + $0x208] sm:$0xff]
    %v181 = vld [vmem:[#allocation5 + $0x210] sm:$0xff]
    %v182 = vld [vmem:[#allocation5 + $0x218] sm:$0xff]
    %v183 = vld [vmem:[#allocation5 + $0x220] sm:$0xff]
    %v184 = vld [vmem:[#allocation5 + $0x228] sm:$0xff]
    %v185 = vld [vmem:[#allocation5 + $0x230] sm:$0xff]
    %v186 = vld [vmem:[#allocation5 + $0x238] sm:$0xff]
    %v187 = vld [vmem:[#allocation5 + $0x240] sm:$0xff]
    %v188 = vld [vmem:[#allocation5 + $0x248] sm:$0xff]
    %v189 = vld [vmem:[#allocation5 + $0x250] sm:$0xff]
    %v190 = vld [vmem:[#allocation5 + $0x258] sm:$0xff]
    %v191 = vld [vmem:[#allocation5 + $0x260] sm:$0xff]
    %v192 = vld [vmem:[#allocation5 + $0x268] sm:$0xff]
    %v193 = vld [vmem:[#allocation5 + $0x270] sm:$0xff]
    %v194 = vld [vmem:[#allocation5 + $0x278] sm:$0xff]
    %v195 = vld [vmem:[#allocation5 + $0x280] sm:$0xff]
    %v196 = vld [vmem:[#allocation5 + $0x288] sm:$0xff]
    %v197 = vld [vmem:[#allocation5 + $0x290] sm:$0xff]
    %v198 = vld [vmem:[#allocation5 + $0x298] sm:$0xff]
    %v199 = vld [vmem:[#allocation5 + $0x2a0] sm:$0xff]
    %v200 = vld [vmem:[#allocation5 + $0x2a8] sm:$0xff]
    %v201 = vld [vmem:[#allocation5 + $0x2b0] sm:$0xff]
    %v202 = vld [vmem:[#allocation5 + $0x2b8] sm:$0xff]
    %v203 = vld [vmem:[#allocation5 + $0x2c0] sm:$0xff]
    %v204 = vld [vmem:[#allocation5 + $0x2c8] sm:$0xff]
    %v205 = vld [vmem:[#allocation5 + $0x2d0] sm:$0xff]
    %v206 = vld [vmem:[#allocation5 + $0x2d8] sm:$0xff]
    %v207 = vld [vmem:[#allocation5 + $0x2e0] sm:$0xff]
    %v208 = vld [vmem:[#allocation5 + $0x2e8] sm:$0xff]
    %v209 = vld [vmem:[#allocation5 + $0x2f0] sm:$0xff]
    %v210 = vld [vmem:[#allocation5 + $0x2f8] sm:$0xff]
    %v211 = vld [vmem:[#allocation5 + $0x300] sm:$0xff]
    %v212 = vld [vmem:[#allocation5 + $0x308] sm:$0xff]
    %v213 = vld [vmem:[#allocation5 + $0x310] sm:$0xff]
    %v214 = vld [vmem:[#allocation5 + $0x318] sm:$0xff]
    %v215 = vld [vmem:[#allocation5 + $0x320] sm:$0xff]
    %v216 = vld [vmem:[#allocation5 + $0x328] sm:$0xff]
    %v217 = vld [vmem:[#allocation5 + $0x330] sm:$0xff]
    %v218 = vld [vmem:[#allocation5 + $0x338] sm:$0xff]
    %v219 = vld [vmem:[#allocation5 + $0x340] sm:$0xff]
    %v220 = vld [vmem:[#allocation5 + $0x348] sm:$0xff]
    %v221 = vld [vmem:[#allocation5 + $0x350] sm:$0xff]
    %v222 = vld [vmem:[#allocation5 + $0x358] sm:$0xff]
    %v223 = vld [vmem:[#allocation5 + $0x360] sm:$0xff]
    %v224 = vld [vmem:[#allocation5 + $0x368] sm:$0xff]
    %v225 = vld [vmem:[#allocation5 + $0x370] sm:$0xff]
    %v226 = vld [vmem:[#allocation5 + $0x378] sm:$0xff]
    %v227 = vld [vmem:[#allocation5 + $0x380] sm:$0xff]
    %v228 = vld [vmem:[#allocation5 + $0x388] sm:$0xff]
    %v229 = vld [vmem:[#allocation5 + $0x390] sm:$0xff]
    %v230 = vld [vmem:[#allocation5 + $0x398] sm:$0xff]
    %v231 = vld [vmem:[#allocation5 + $0x3a0] sm:$0xff]
    %v232 = vld [vmem:[#allocation5 + $0x3a8] sm:$0xff]
    %v233 = vld [vmem:[#allocation5 + $0x3b0] sm:$0xff]
    %v234 = vld [vmem:[#allocation5 + $0x3b8] sm:$0xff]
    %v235 = vld [vmem:[#allocation5 + $0x3c0] sm:$0xff]
    %v236 = vld [vmem:[#allocation5 + $0x3c8] sm:$0xff]
    %v237 = vld [vmem:[#allocation5 + $0x3d0] sm:$0xff]
    %v238 = vld [vmem:[#allocation5 + $0x3d8] sm:$0xff]
    %v239 = vld [vmem:[#allocation5 + $0x3e0] sm:$0xff]
    %v240 = vld [vmem:[#allocation5 + $0x3e8] sm:$0xff]
    %v241 = vld [vmem:[#allocation5 + $0x3f0] sm:$0xff]
    %v242 = vld [vmem:[#allocation5 + $0x3f8] sm:$0xff]
    %v243 = vld [vmem:[#allocation5 + $0x400] sm:$0xff]
    %v244 = vld [vmem:[#allocation5 + $0x408] sm:$0xff]
    %v245 = vld [vmem:[#allocation5 + $0x410] sm:$0xff]
    %v246 = vld [vmem:[#allocation5 + $0x418] sm:$0xff]
    %v247 = vld [vmem:[#allocation5 + $0x420] sm:$0xff]
    %v248 = vld [vmem:[#allocation5 + $0x428] sm:$0xff]
    %v249 = vld [vmem:[#allocation5 + $0x430] sm:$0xff]
    %v250 = vld [vmem:[#allocation5 + $0x438] sm:$0xff]
    %v251 = vld [vmem:[#allocation5 + $0x440] sm:$0xff]
    %v252 = vld [vmem:[#allocation5 + $0x448] sm:$0xff]
    %v253 = vld [vmem:[#allocation5 + $0x450] sm:$0xff]
    %v254 = vld [vmem:[#allocation5 + $0x458] sm:$0xff]
    %v255 = vld [vmem:[#allocation5 + $0x460] sm:$0xff]
    %v256 = vld [vmem:[#allocation5 + $0x468] sm:$0xff]
    %v257 = vld [vmem:[#allocation5 + $0x470] sm:$0xff]
    %v258 = vld [vmem:[#allocation5 + $0x478] sm:$0xff]
    %v259 = vld [vmem:[#allocation5 + $0x480] sm:$0xff]
    %v260 = vld [vmem:[#allocation5 + $0x488] sm:$0xff]
    %v261 = vld [vmem:[#allocation5 + $0x490] sm:$0xff]
    %v262 = vld [vmem:[#allocation5 + $0x498] sm:$0xff]
    %v263 = vld [vmem:[#allocation5 + $0x4a0] sm:$0xff]
    %v264 = vld [vmem:[#allocation5 + $0x4a8] sm:$0xff]
    %v265 = vld [vmem:[#allocation5 + $0x4b0] sm:$0xff]
    %v266 = vld [vmem:[#allocation5 + $0x4b8] sm:$0xff]
    %v267 = vld [vmem:[#allocation5 + $0x4c0] sm:$0xff]
    %v268 = vld [vmem:[#allocation5 + $0x4c8] sm:$0xff]
    %v269 = vld [vmem:[#allocation5 + $0x4d0] sm:$0xff]
    %v270 = vld [vmem:[#allocation5 + $0x4d8] sm:$0xff]
    %v271 = vld [vmem:[#allocation5 + $0x4e0] sm:$0xff]
    %v272 = vld [vmem:[#allocation5 + $0x4e8] sm:$0xff]
    %v273 = vld [vmem:[#allocation5 + $0x4f0] sm:$0xff]
    %v274 = vld [vmem:[#allocation5 + $0x4f8] sm:$0xff]
    %v275 = vld [vmem:[#allocation5 + $0x500] sm:$0xff]
    %v276 = vld [vmem:[#allocation5 + $0x508] sm:$0xff]
    %v277 = vld [vmem:[#allocation5 + $0x510] sm:$0xff]
    %v278 = vld [vmem:[#allocation5 + $0x518] sm:$0xff]
    %v279 = vld [vmem:[#allocation5 + $0x520] sm:$0xff]
    %v280 = vld [vmem:[#allocation5 + $0x528] sm:$0xff]
    %v281 = vld [vmem:[#allocation5 + $0x530] sm:$0xff]
    %v282 = vld [vmem:[#allocation5 + $0x538] sm:$0xff]
    %v283 = vld [vmem:[#allocation5 + $0x540] sm:$0xff]
    %v284 = vld [vmem:[#allocation5 + $0x548] sm:$0xff]
    %v285 = vld [vmem:[#allocation5 + $0x550] sm:$0xff]
    %v286 = vld [vmem:[#allocation5 + $0x558] sm:$0xff]
    %v287 = vld [vmem:[#allocation5 + $0x560] sm:$0xff]
    %v288 = vld [vmem:[#allocation5 + $0x568] sm:$0xff]
    %v289 = vld [vmem:[#allocation5 + $0x570] sm:$0xff]
    %v290 = vld [vmem:[#allocation5 + $0x578] sm:$0xff]
    %v291 = vld [vmem:[#allocation5 + $0x580] sm:$0xff]
    %v292 = vld [vmem:[#allocation5 + $0x588] sm:$0xff]
    %v293 = vld [vmem:[#allocation5 + $0x590] sm:$0xff]
    %v294 = vld [vmem:[#allocation5 + $0x598] sm:$0xff]
    %v295 = vld [vmem:[#allocation5 + $0x5a0] sm:$0xff]
    %v296 = vld [vmem:[#allocation5 + $0x5a8] sm:$0xff]
    %v297 = vld [vmem:[#allocation5 + $0x5b0] sm:$0xff]
    %v298 = vld [vmem:[#allocation5 + $0x5b8] sm:$0xff]
    %v299 = vld [vmem:[#allocation5 + $0x5c0] sm:$0xff]
    %v300 = vld [vmem:[#allocation5 + $0x5c8] sm:$0xff]
    %v301 = vld [vmem:[#allocation5 + $0x5d0] sm:$0xff]
    %v302 = vld [vmem:[#allocation5 + $0x5d8] sm:$0xff]
    %v303 = vld [vmem:[#allocation5 + $0x5e0] sm:$0xff]
    %v304 = vld [vmem:[#allocation5 + $0x5e8] sm:$0xff]
    %v305 = vld [vmem:[#allocation5 + $0x5f0] sm:$0xff]
    %v306 = vld [vmem:[#allocation5 + $0x5f8] sm:$0xff]
    %v307 = vld [vmem:[%s2] sm:$0xf]
    %v309 = vlaneseq
    %v310 = vshrl.u32 %v309, 7
    %v311 = vsub.s32 0, %v310
    %v312 = vrot.slane %v307, %v311
    %v313 = vlaneseq
    %v314 = vshrl.u32 %v313, 7
    %v315 = vsub.s32 1, %v314
    %v316 = vrot.slane %v307, %v315
    %v317 = vlaneseq
    %v318 = vshrl.u32 %v317, 7
    %v319 = vsub.s32 2, %v318
    %v320 = vrot.slane %v307, %v319
    %v321 = vlaneseq
    %v322 = vshrl.u32 %v321, 7
    %v323 = vsub.s32 3, %v322
    %v324 = vrot.slane %v307, %v323
    %v521 = vunpack.c.l.b16 %v115
    %v522 = vunpack.c.h.b16 %v115
    %v523 = vunpack.c.l.b16 %v116
    %v524 = vunpack.c.h.b16 %v116
    %v525 = vunpack.c.l.b16 %v117
    %v526 = vunpack.c.h.b16 %v117
    %v527 = vunpack.c.l.b16 %v118
    %v528 = vunpack.c.h.b16 %v118
    %v529 = vunpack.c.l.b16 %v119
    %v530 = vunpack.c.h.b16 %v119
    %v531 = vunpack.c.l.b16 %v120
    %v532 = vunpack.c.h.b16 %v120
    %v533 = vunpack.c.l.b16 %v121
    %v534 = vunpack.c.h.b16 %v121
    %v535 = vunpack.c.l.b16 %v122
    %v536 = vunpack.c.h.b16 %v122
    %v537 = vunpack.c.l.b16 %v123
    %v538 = vunpack.c.h.b16 %v123
    %v539 = vunpack.c.l.b16 %v124
    %v540 = vunpack.c.h.b16 %v124
    %v541 = vunpack.c.l.b16 %v125
    %v542 = vunpack.c.h.b16 %v125
    %v543 = vunpack.c.l.b16 %v126
    %v544 = vunpack.c.h.b16 %v126
    %v545 = vunpack.c.l.b16 %v127
    %v546 = vunpack.c.h.b16 %v127
    %v547 = vunpack.c.l.b16 %v128
    %v548 = vunpack.c.h.b16 %v128
    %v549 = vunpack.c.l.b16 %v129
    %v550 = vunpack.c.h.b16 %v129
    %v551 = vunpack.c.l.b16 %v130
    %v552 = vunpack.c.h.b16 %v130
    %v553 = vunpack.c.l.b16 %v131
    %v554 = vunpack.c.h.b16 %v131
    %v555 = vunpack.c.l.b16 %v132
    %v556 = vunpack.c.h.b16 %v132
    %v557 = vunpack.c.l.b16 %v133
    %v558 = vunpack.c.h.b16 %v133
    %v559 = vunpack.c.l.b16 %v134
    %v560 = vunpack.c.h.b16 %v134
    %v561 = vunpack.c.l.b16 %v135
    %v562 = vunpack.c.h.b16 %v135
    %v563 = vunpack.c.l.b16 %v136
    %v564 = vunpack.c.h.b16 %v136
    %v565 = vunpack.c.l.b16 %v137
    %v566 = vunpack.c.h.b16 %v137
    %v567 = vunpack.c.l.b16 %v138
    %v568 = vunpack.c.h.b16 %v138
    %v569 = vunpack.c.l.b16 %v139
    %v570 = vunpack.c.h.b16 %v139
    %v571 = vunpack.c.l.b16 %v140
    %v572 = vunpack.c.h.b16 %v140
    %v573 = vunpack.c.l.b16 %v141
    %v574 = vunpack.c.h.b16 %v141
    %v575 = vunpack.c.l.b16 %v142
    %v576 = vunpack.c.h.b16 %v142
    %v577 = vunpack.c.l.b16 %v143
    %v578 = vunpack.c.h.b16 %v143
    %v579 = vunpack.c.l.b16 %v144
    %v580 = vunpack.c.h.b16 %v144
    %v581 = vunpack.c.l.b16 %v145
    %v582 = vunpack.c.h.b16 %v145
    %v583 = vunpack.c.l.b16 %v146
    %v584 = vunpack.c.h.b16 %v146
    %v585 = vunpack.c.l.b16 %v147
    %v586 = vunpack.c.h.b16 %v147
    %v587 = vunpack.c.l.b16 %v148
    %v588 = vunpack.c.h.b16 %v148
    %v589 = vunpack.c.l.b16 %v149
    %v590 = vunpack.c.h.b16 %v149
    %v591 = vunpack.c.l.b16 %v150
    %v592 = vunpack.c.h.b16 %v150
    %v593 = vunpack.c.l.b16 %v151
    %v594 = vunpack.c.h.b16 %v151
    %v595 = vunpack.c.l.b16 %v152
    %v596 = vunpack.c.h.b16 %v152
    %v597 = vunpack.c.l.b16 %v153
    %v598 = vunpack.c.h.b16 %v153
    %v599 = vunpack.c.l.b16 %v154
    %v600 = vunpack.c.h.b16 %v154
    %v601 = vunpack.c.l.b16 %v155
    %v602 = vunpack.c.h.b16 %v155
    %v603 = vunpack.c.l.b16 %v156
    %v604 = vunpack.c.h.b16 %v156
    %v605 = vunpack.c.l.b16 %v157
    %v606 = vunpack.c.h.b16 %v157
    %v607 = vunpack.c.l.b16 %v158
    %v608 = vunpack.c.h.b16 %v158
    %v609 = vunpack.c.l.b16 %v159
    %v610 = vunpack.c.h.b16 %v159
    %v611 = vunpack.c.l.b16 %v160
    %v612 = vunpack.c.h.b16 %v160
    %v613 = vunpack.c.l.b16 %v161
    %v614 = vunpack.c.h.b16 %v161
    %v615 = vunpack.c.l.b16 %v162
    %v616 = vunpack.c.h.b16 %v162
    %v617 = vunpack.c.l.b16 %v163
    %v618 = vunpack.c.h.b16 %v163
    %v619 = vunpack.c.l.b16 %v164
    %v620 = vunpack.c.h.b16 %v164
    %v621 = vunpack.c.l.b16 %v165
    %v622 = vunpack.c.h.b16 %v165
    %v623 = vunpack.c.l.b16 %v166
    %v624 = vunpack.c.h.b16 %v166
    %v625 = vunpack.c.l.b16 %v167
    %v626 = vunpack.c.h.b16 %v167
    %v627 = vunpack.c.l.b16 %v168
    %v628 = vunpack.c.h.b16 %v168
    %v629 = vunpack.c.l.b16 %v169
    %v630 = vunpack.c.h.b16 %v169
    %v631 = vunpack.c.l.b16 %v170
    %v632 = vunpack.c.h.b16 %v170
    %v633 = vunpack.c.l.b16 %v171
    %v634 = vunpack.c.h.b16 %v171
    %v635 = vunpack.c.l.b16 %v172
    %v636 = vunpack.c.h.b16 %v172
    %v637 = vunpack.c.l.b16 %v173
    %v638 = vunpack.c.h.b16 %v173
    %v639 = vunpack.c.l.b16 %v174
    %v640 = vunpack.c.h.b16 %v174
    %v641 = vunpack.c.l.b16 %v175
    %v642 = vunpack.c.h.b16 %v175
    %v643 = vunpack.c.l.b16 %v176
    %v644 = vunpack.c.h.b16 %v176
    %v645 = vunpack.c.l.b16 %v177
    %v646 = vunpack.c.h.b16 %v177
    %v647 = vunpack.c.l.b16 %v178
    %v648 = vunpack.c.h.b16 %v178
    %v649 = vunpack.c.l.b16 %v179
    %v650 = vunpack.c.h.b16 %v179
    %v651 = vunpack.c.l.b16 %v180
    %v652 = vunpack.c.h.b16 %v180
    %v653 = vunpack.c.l.b16 %v181
    %v654 = vunpack.c.h.b16 %v181
    %v655 = vunpack.c.l.b16 %v182
    %v656 = vunpack.c.h.b16 %v182
    %v657 = vunpack.c.l.b16 %v183
    %v658 = vunpack.c.h.b16 %v183
    %v659 = vunpack.c.l.b16 %v184
    %v660 = vunpack.c.h.b16 %v184
    %v661 = vunpack.c.l.b16 %v185
    %v662 = vunpack.c.h.b16 %v185
    %v663 = vunpack.c.l.b16 %v186
    %v664 = vunpack.c.h.b16 %v186
    %v665 = vunpack.c.l.b16 %v187
    %v666 = vunpack.c.h.b16 %v187
    %v667 = vunpack.c.l.b16 %v188
    %v668 = vunpack.c.h.b16 %v188
    %v669 = vunpack.c.l.b16 %v189
    %v670 = vunpack.c.h.b16 %v189
    %v671 = vunpack.c.l.b16 %v190
    %v672 = vunpack.c.h.b16 %v190
    %v673 = vunpack.c.l.b16 %v191
    %v674 = vunpack.c.h.b16 %v191
    %v675 = vunpack.c.l.b16 %v192
    %v676 = vunpack.c.h.b16 %v192
    %v677 = vunpack.c.l.b16 %v193
    %v678 = vunpack.c.h.b16 %v193
    %v679 = vunpack.c.l.b16 %v194
    %v680 = vunpack.c.h.b16 %v194
    %v681 = vunpack.c.l.b16 %v195
    %v682 = vunpack.c.h.b16 %v195
    %v683 = vunpack.c.l.b16 %v196
    %v684 = vunpack.c.h.b16 %v196
    %v685 = vunpack.c.l.b16 %v197
    %v686 = vunpack.c.h.b16 %v197
    %v687 = vunpack.c.l.b16 %v198
    %v688 = vunpack.c.h.b16 %v198
    %v689 = vunpack.c.l.b16 %v199
    %v690 = vunpack.c.h.b16 %v199
    %v691 = vunpack.c.l.b16 %v200
    %v692 = vunpack.c.h.b16 %v200
    %v693 = vunpack.c.l.b16 %v201
    %v694 = vunpack.c.h.b16 %v201
    %v695 = vunpack.c.l.b16 %v202
    %v696 = vunpack.c.h.b16 %v202
    %v697 = vunpack.c.l.b16 %v203
    %v698 = vunpack.c.h.b16 %v203
    %v699 = vunpack.c.l.b16 %v204
    %v700 = vunpack.c.h.b16 %v204
    %v701 = vunpack.c.l.b16 %v205
    %v702 = vunpack.c.h.b16 %v205
    %v703 = vunpack.c.l.b16 %v206
    %v704 = vunpack.c.h.b16 %v206
    %v705 = vunpack.c.l.b16 %v207
    %v706 = vunpack.c.h.b16 %v207
    %v707 = vunpack.c.l.b16 %v208
    %v708 = vunpack.c.h.b16 %v208
    %v709 = vunpack.c.l.b16 %v209
    %v710 = vunpack.c.h.b16 %v209
    %v711 = vunpack.c.l.b16 %v210
    %v712 = vunpack.c.h.b16 %v210
    %v713 = vunpack.c.l.b16 %v211
    %v714 = vunpack.c.h.b16 %v211
    %v715 = vunpack.c.l.b16 %v212
    %v716 = vunpack.c.h.b16 %v212
    %v717 = vunpack.c.l.b16 %v213
    %v718 = vunpack.c.h.b16 %v213
    %v719 = vunpack.c.l.b16 %v214
    %v720 = vunpack.c.h.b16 %v214
    %v721 = vunpack.c.l.b16 %v215
    %v722 = vunpack.c.h.b16 %v215
    %v723 = vunpack.c.l.b16 %v216
    %v724 = vunpack.c.h.b16 %v216
    %v725 = vunpack.c.l.b16 %v217
    %v726 = vunpack.c.h.b16 %v217
    %v727 = vunpack.c.l.b16 %v218
    %v728 = vunpack.c.h.b16 %v218
    %v729 = vunpack.c.l.b16 %v219
    %v730 = vunpack.c.h.b16 %v219
    %v731 = vunpack.c.l.b16 %v220
    %v732 = vunpack.c.h.b16 %v220
    %v733 = vunpack.c.l.b16 %v221
    %v734 = vunpack.c.h.b16 %v221
    %v735 = vunpack.c.l.b16 %v222
    %v736 = vunpack.c.h.b16 %v222
    %v737 = vunpack.c.l.b16 %v223
    %v738 = vunpack.c.h.b16 %v223
    %v739 = vunpack.c.l.b16 %v224
    %v740 = vunpack.c.h.b16 %v224
    %v741 = vunpack.c.l.b16 %v225
    %v742 = vunpack.c.h.b16 %v225
    %v743 = vunpack.c.l.b16 %v226
    %v744 = vunpack.c.h.b16 %v226
    %v745 = vunpack.c.l.b16 %v227
    %v746 = vunpack.c.h.b16 %v227
    %v747 = vunpack.c.l.b16 %v228
    %v748 = vunpack.c.h.b16 %v228
    %v749 = vunpack.c.l.b16 %v229
    %v750 = vunpack.c.h.b16 %v229
    %v751 = vunpack.c.l.b16 %v230
    %v752 = vunpack.c.h.b16 %v230
    %v753 = vunpack.c.l.b16 %v231
    %v754 = vunpack.c.h.b16 %v231
    %v755 = vunpack.c.l.b16 %v232
    %v756 = vunpack.c.h.b16 %v232
    %v757 = vunpack.c.l.b16 %v233
    %v758 = vunpack.c.h.b16 %v233
    %v759 = vunpack.c.l.b16 %v234
    %v760 = vunpack.c.h.b16 %v234
    %v761 = vunpack.c.l.b16 %v235
    %v762 = vunpack.c.h.b16 %v235
    %v763 = vunpack.c.l.b16 %v236
    %v764 = vunpack.c.h.b16 %v236
    %v765 = vunpack.c.l.b16 %v237
    %v766 = vunpack.c.h.b16 %v237
    %v767 = vunpack.c.l.b16 %v238
    %v768 = vunpack.c.h.b16 %v238
    %v769 = vunpack.c.l.b16 %v239
    %v770 = vunpack.c.h.b16 %v239
    %v771 = vunpack.c.l.b16 %v240
    %v772 = vunpack.c.h.b16 %v240
    %v773 = vunpack.c.l.b16 %v241
    %v774 = vunpack.c.h.b16 %v241
    %v775 = vunpack.c.l.b16 %v242
    %v776 = vunpack.c.h.b16 %v242
    %v777 = vunpack.c.l.b16 %v243
    %v778 = vunpack.c.h.b16 %v243
    %v779 = vunpack.c.l.b16 %v244
    %v780 = vunpack.c.h.b16 %v244
    %v781 = vunpack.c.l.b16 %v245
    %v782 = vunpack.c.h.b16 %v245
    %v783 = vunpack.c.l.b16 %v246
    %v784 = vunpack.c.h.b16 %v246
    %v785 = vunpack.c.l.b16 %v247
    %v786 = vunpack.c.h.b16 %v247
    %v787 = vunpack.c.l.b16 %v248
    %v788 = vunpack.c.h.b16 %v248
    %v789 = vunpack.c.l.b16 %v249
    %v790 = vunpack.c.h.b16 %v249
    %v791 = vunpack.c.l.b16 %v250
    %v792 = vunpack.c.h.b16 %v250
    %v793 = vunpack.c.l.b16 %v251
    %v794 = vunpack.c.h.b16 %v251
    %v795 = vunpack.c.l.b16 %v252
    %v796 = vunpack.c.h.b16 %v252
    %v797 = vunpack.c.l.b16 %v253
    %v798 = vunpack.c.h.b16 %v253
    %v799 = vunpack.c.l.b16 %v254
    %v800 = vunpack.c.h.b16 %v254
    %v801 = vunpack.c.l.b16 %v255
    %v802 = vunpack.c.h.b16 %v255
    %v803 = vunpack.c.l.b16 %v256
    %v804 = vunpack.c.h.b16 %v256
    %v805 = vunpack.c.l.b16 %v257
    %v806 = vunpack.c.h.b16 %v257
    %v807 = vunpack.c.l.b16 %v258
    %v808 = vunpack.c.h.b16 %v258
    %v809 = vunpack.c.l.b16 %v259
    %v810 = vunpack.c.h.b16 %v259
    %v811 = vunpack.c.l.b16 %v260
    %v812 = vunpack.c.h.b16 %v260
    %v813 = vunpack.c.l.b16 %v261
    %v814 = vunpack.c.h.b16 %v261
    %v815 = vunpack.c.l.b16 %v262
    %v816 = vunpack.c.h.b16 %v262
    %v817 = vunpack.c.l.b16 %v263
    %v818 = vunpack.c.h.b16 %v263
    %v819 = vunpack.c.l.b16 %v264
    %v820 = vunpack.c.h.b16 %v264
    %v821 = vunpack.c.l.b16 %v265
    %v822 = vunpack.c.h.b16 %v265
    %v823 = vunpack.c.l.b16 %v266
    %v824 = vunpack.c.h.b16 %v266
    %v825 = vunpack.c.l.b16 %v267
    %v826 = vunpack.c.h.b16 %v267
    %v827 = vunpack.c.l.b16 %v268
    %v828 = vunpack.c.h.b16 %v268
    %v829 = vunpack.c.l.b16 %v269
    %v830 = vunpack.c.h.b16 %v269
    %v831 = vunpack.c.l.b16 %v270
    %v832 = vunpack.c.h.b16 %v270
    %v833 = vunpack.c.l.b16 %v271
    %v834 = vunpack.c.h.b16 %v271
    %v835 = vunpack.c.l.b16 %v272
    %v836 = vunpack.c.h.b16 %v272
    %v837 = vunpack.c.l.b16 %v273
    %v838 = vunpack.c.h.b16 %v273
    %v839 = vunpack.c.l.b16 %v274
    %v840 = vunpack.c.h.b16 %v274
    %v841 = vunpack.c.l.b16 %v275
    %v842 = vunpack.c.h.b16 %v275
    %v843 = vunpack.c.l.b16 %v276
    %v844 = vunpack.c.h.b16 %v276
    %v845 = vunpack.c.l.b16 %v277
    %v846 = vunpack.c.h.b16 %v277
    %v847 = vunpack.c.l.b16 %v278
    %v848 = vunpack.c.h.b16 %v278
    %v849 = vunpack.c.l.b16 %v279
    %v850 = vunpack.c.h.b16 %v279
    %v851 = vunpack.c.l.b16 %v280
    %v852 = vunpack.c.h.b16 %v280
    %v853 = vunpack.c.l.b16 %v281
    %v854 = vunpack.c.h.b16 %v281
    %v855 = vunpack.c.l.b16 %v282
    %v856 = vunpack.c.h.b16 %v282
    %v857 = vunpack.c.l.b16 %v283
    %v858 = vunpack.c.h.b16 %v283
    %v859 = vunpack.c.l.b16 %v284
    %v860 = vunpack.c.h.b16 %v284
    %v861 = vunpack.c.l.b16 %v285
    %v862 = vunpack.c.h.b16 %v285
    %v863 = vunpack.c.l.b16 %v286
    %v864 = vunpack.c.h.b16 %v286
    %v865 = vunpack.c.l.b16 %v287
    %v866 = vunpack.c.h.b16 %v287
    %v867 = vunpack.c.l.b16 %v288
    %v868 = vunpack.c.h.b16 %v288
    %v869 = vunpack.c.l.b16 %v289
    %v870 = vunpack.c.h.b16 %v289
    %v871 = vunpack.c.l.b16 %v290
    %v872 = vunpack.c.h.b16 %v290
    %v873 = vunpack.c.l.b16 %v291
    %v874 = vunpack.c.h.b16 %v291
    %v875 = vunpack.c.l.b16 %v292
    %v876 = vunpack.c.h.b16 %v292
    %v877 = vunpack.c.l.b16 %v293
    %v878 = vunpack.c.h.b16 %v293
    %v879 = vunpack.c.l.b16 %v294
    %v880 = vunpack.c.h.b16 %v294
    %v881 = vunpack.c.l.b16 %v295
    %v882 = vunpack.c.h.b16 %v295
    %v883 = vunpack.c.l.b16 %v296
    %v884 = vunpack.c.h.b16 %v296
    %v885 = vunpack.c.l.b16 %v297
    %v886 = vunpack.c.h.b16 %v297
    %v887 = vunpack.c.l.b16 %v298
    %v888 = vunpack.c.h.b16 %v298
    %v889 = vunpack.c.l.b16 %v299
    %v890 = vunpack.c.h.b16 %v299
    %v891 = vunpack.c.l.b16 %v300
    %v892 = vunpack.c.h.b16 %v300
    %v893 = vunpack.c.l.b16 %v301
    %v894 = vunpack.c.h.b16 %v301
    %v895 = vunpack.c.l.b16 %v302
    %v896 = vunpack.c.h.b16 %v302
    %v897 = vunpack.c.l.b16 %v303
    %v898 = vunpack.c.h.b16 %v303
    %v899 = vunpack.c.l.b16 %v304
    %v900 = vunpack.c.h.b16 %v304
    %v901 = vunpack.c.l.b16 %v305
    %v902 = vunpack.c.h.b16 %v305
    %v903 = vunpack.c.l.b16 %v306
    %v904 = vunpack.c.h.b16 %v306
    %v905 = vpack.c.b16 %v525, %v521
    %v906 = vpack.c.b16 %v526, %v522
    %v907 = vpack.c.b16 %v527, %v523
    %v908 = vpack.c.b16 %v528, %v524
    %v909 = vpack.c.b16 %v533, %v529
    %v910 = vpack.c.b16 %v534, %v530
    %v911 = vpack.c.b16 %v535, %v531
    %v912 = vpack.c.b16 %v536, %v532
    %v913 = vpack.c.b16 %v541, %v537
    %v914 = vpack.c.b16 %v542, %v538
    %v915 = vpack.c.b16 %v543, %v539
    %v916 = vpack.c.b16 %v544, %v540
    %v917 = vpack.c.b16 %v549, %v545
    %v918 = vpack.c.b16 %v550, %v546
    %v919 = vpack.c.b16 %v551, %v547
    %v920 = vpack.c.b16 %v552, %v548
    %v921 = vpack.c.b16 %v557, %v553
    %v922 = vpack.c.b16 %v558, %v554
    %v923 = vpack.c.b16 %v559, %v555
    %v924 = vpack.c.b16 %v560, %v556
    %v925 = vpack.c.b16 %v565, %v561
    %v926 = vpack.c.b16 %v566, %v562
    %v927 = vpack.c.b16 %v567, %v563
    %v928 = vpack.c.b16 %v568, %v564
    %v929 = vpack.c.b16 %v573, %v569
    %v930 = vpack.c.b16 %v574, %v570
    %v931 = vpack.c.b16 %v575, %v571
    %v932 = vpack.c.b16 %v576, %v572
    %v933 = vpack.c.b16 %v581, %v577
    %v934 = vpack.c.b16 %v582, %v578
    %v935 = vpack.c.b16 %v583, %v579
    %v936 = vpack.c.b16 %v584, %v580
    %v937 = vpack.c.b16 %v589, %v585
    %v938 = vpack.c.b16 %v590, %v586
    %v939 = vpack.c.b16 %v591, %v587
    %v940 = vpack.c.b16 %v592, %v588
    %v941 = vpack.c.b16 %v597, %v593
    %v942 = vpack.c.b16 %v598, %v594
    %v943 = vpack.c.b16 %v599, %v595
    %v944 = vpack.c.b16 %v600, %v596
    %v945 = vpack.c.b16 %v605, %v601
    %v946 = vpack.c.b16 %v606, %v602
    %v947 = vpack.c.b16 %v607, %v603
    %v948 = vpack.c.b16 %v608, %v604
    %v949 = vpack.c.b16 %v613, %v609
    %v950 = vpack.c.b16 %v614, %v610
    %v951 = vpack.c.b16 %v615, %v611
    %v952 = vpack.c.b16 %v616, %v612
    %v953 = vpack.c.b16 %v621, %v617
    %v954 = vpack.c.b16 %v622, %v618
    %v955 = vpack.c.b16 %v623, %v619
    %v956 = vpack.c.b16 %v624, %v620
    %v957 = vpack.c.b16 %v629, %v625
    %v958 = vpack.c.b16 %v630, %v626
    %v959 = vpack.c.b16 %v631, %v627
    %v960 = vpack.c.b16 %v632, %v628
    %v961 = vpack.c.b16 %v637, %v633
    %v962 = vpack.c.b16 %v638, %v634
    %v963 = vpack.c.b16 %v639, %v635
    %v964 = vpack.c.b16 %v640, %v636
    %v965 = vpack.c.b16 %v645, %v641
    %v966 = vpack.c.b16 %v646, %v642
    %v967 = vpack.c.b16 %v647, %v643
    %v968 = vpack.c.b16 %v648, %v644
    %v969 = vpack.c.b16 %v653, %v649
    %v970 = vpack.c.b16 %v654, %v650
    %v971 = vpack.c.b16 %v655, %v651
    %v972 = vpack.c.b16 %v656, %v652
    %v973 = vpack.c.b16 %v661, %v657
    %v974 = vpack.c.b16 %v662, %v658
    %v975 = vpack.c.b16 %v663, %v659
    %v976 = vpack.c.b16 %v664, %v660
    %v977 = vpack.c.b16 %v669, %v665
    %v978 = vpack.c.b16 %v670, %v666
    %v979 = vpack.c.b16 %v671, %v667
    %v980 = vpack.c.b16 %v672, %v668
    %v981 = vpack.c.b16 %v677, %v673
    %v982 = vpack.c.b16 %v678, %v674
    %v983 = vpack.c.b16 %v679, %v675
    %v984 = vpack.c.b16 %v680, %v676
    %v985 = vpack.c.b16 %v685, %v681
    %v986 = vpack.c.b16 %v686, %v682
    %v987 = vpack.c.b16 %v687, %v683
    %v988 = vpack.c.b16 %v688, %v684
    %v989 = vpack.c.b16 %v693, %v689
    %v990 = vpack.c.b16 %v694, %v690
    %v991 = vpack.c.b16 %v695, %v691
    %v992 = vpack.c.b16 %v696, %v692
    %v993 = vpack.c.b16 %v701, %v697
    %v994 = vpack.c.b16 %v702, %v698
    %v995 = vpack.c.b16 %v703, %v699
    %v996 = vpack.c.b16 %v704, %v700
    %v997 = vpack.c.b16 %v709, %v705
    %v998 = vpack.c.b16 %v710, %v706
    %v999 = vpack.c.b16 %v711, %v707
    %v1000 = vpack.c.b16 %v712, %v708
    %v1001 = vpack.c.b16 %v717, %v713
    %v1002 = vpack.c.b16 %v718, %v714
    %v1003 = vpack.c.b16 %v719, %v715
    %v1004 = vpack.c.b16 %v720, %v716
    %v1005 = vpack.c.b16 %v725, %v721
    %v1006 = vpack.c.b16 %v726, %v722
    %v1007 = vpack.c.b16 %v727, %v723
    %v1008 = vpack.c.b16 %v728, %v724
    %v1009 = vpack.c.b16 %v733, %v729
    %v1010 = vpack.c.b16 %v734, %v730
    %v1011 = vpack.c.b16 %v735, %v731
    %v1012 = vpack.c.b16 %v736, %v732
    %v1013 = vpack.c.b16 %v741, %v737
    %v1014 = vpack.c.b16 %v742, %v738
    %v1015 = vpack.c.b16 %v743, %v739
    %v1016 = vpack.c.b16 %v744, %v740
    %v1017 = vpack.c.b16 %v749, %v745
    %v1018 = vpack.c.b16 %v750, %v746
    %v1019 = vpack.c.b16 %v751, %v747
    %v1020 = vpack.c.b16 %v752, %v748
    %v1021 = vpack.c.b16 %v757, %v753
    %v1022 = vpack.c.b16 %v758, %v754
    %v1023 = vpack.c.b16 %v759, %v755
    %v1024 = vpack.c.b16 %v760, %v756
    %v1025 = vpack.c.b16 %v765, %v761
    %v1026 = vpack.c.b16 %v766, %v762
    %v1027 = vpack.c.b16 %v767, %v763
    %v1028 = vpack.c.b16 %v768, %v764
    %v1029 = vpack.c.b16 %v773, %v769
    %v1030 = vpack.c.b16 %v774, %v770
    %v1031 = vpack.c.b16 %v775, %v771
    %v1032 = vpack.c.b16 %v776, %v772
    %v1033 = vpack.c.b16 %v781, %v777
    %v1034 = vpack.c.b16 %v782, %v778
    %v1035 = vpack.c.b16 %v783, %v779
    %v1036 = vpack.c.b16 %v784, %v780
    %v1037 = vpack.c.b16 %v789, %v785
    %v1038 = vpack.c.b16 %v790, %v786
    %v1039 = vpack.c.b16 %v791, %v787
    %v1040 = vpack.c.b16 %v792, %v788
    %v1041 = vpack.c.b16 %v797, %v793
    %v1042 = vpack.c.b16 %v798, %v794
    %v1043 = vpack.c.b16 %v799, %v795
    %v1044 = vpack.c.b16 %v800, %v796
    %v1045 = vpack.c.b16 %v805, %v801
    %v1046 = vpack.c.b16 %v806, %v802
    %v1047 = vpack.c.b16 %v807, %v803
    %v1048 = vpack.c.b16 %v808, %v804
    %v1049 = vpack.c.b16 %v813, %v809
    %v1050 = vpack.c.b16 %v814, %v810
    %v1051 = vpack.c.b16 %v815, %v811
    %v1052 = vpack.c.b16 %v816, %v812
    %v1053 = vpack.c.b16 %v821, %v817
    %v1054 = vpack.c.b16 %v822, %v818
    %v1055 = vpack.c.b16 %v823, %v819
    %v1056 = vpack.c.b16 %v824, %v820
    %v1057 = vpack.c.b16 %v829, %v825
    %v1058 = vpack.c.b16 %v830, %v826
    %v1059 = vpack.c.b16 %v831, %v827
    %v1060 = vpack.c.b16 %v832, %v828
    %v1061 = vpack.c.b16 %v837, %v833
    %v1062 = vpack.c.b16 %v838, %v834
    %v1063 = vpack.c.b16 %v839, %v835
    %v1064 = vpack.c.b16 %v840, %v836
    %v1065 = vpack.c.b16 %v845, %v841
    %v1066 = vpack.c.b16 %v846, %v842
    %v1067 = vpack.c.b16 %v847, %v843
    %v1068 = vpack.c.b16 %v848, %v844
    %v1069 = vpack.c.b16 %v853, %v849
    %v1070 = vpack.c.b16 %v854, %v850
    %v1071 = vpack.c.b16 %v855, %v851
    %v1072 = vpack.c.b16 %v856, %v852
    %v1073 = vpack.c.b16 %v861, %v857
    %v1074 = vpack.c.b16 %v862, %v858
    %v1075 = vpack.c.b16 %v863, %v859
    %v1076 = vpack.c.b16 %v864, %v860
    %v1077 = vpack.c.b16 %v869, %v865
    %v1078 = vpack.c.b16 %v870, %v866
    %v1079 = vpack.c.b16 %v871, %v867
    %v1080 = vpack.c.b16 %v872, %v868
    %v1081 = vpack.c.b16 %v877, %v873
    %v1082 = vpack.c.b16 %v878, %v874
    %v1083 = vpack.c.b16 %v879, %v875
    %v1084 = vpack.c.b16 %v880, %v876
    %v1085 = vpack.c.b16 %v885, %v881
    %v1086 = vpack.c.b16 %v886, %v882
    %v1087 = vpack.c.b16 %v887, %v883
    %v1088 = vpack.c.b16 %v888, %v884
    %v1089 = vpack.c.b16 %v893, %v889
    %v1090 = vpack.c.b16 %v894, %v890
    %v1091 = vpack.c.b16 %v895, %v891
    %v1092 = vpack.c.b16 %v896, %v892
    %v1093 = vpack.c.b16 %v901, %v897
    %v1094 = vpack.c.b16 %v902, %v898
    %v1095 = vpack.c.b16 %v903, %v899
    %v1096 = vpack.c.b16 %v904, %v900
    %1289 = vmatprep.subr.bf16.mxu0 %v906
    %1290 = vmatpush1.bf16.msra.mxu0 %v905
    %1291 = vmatprep.subr.bf16.mxu0 %v910
    %1292 = vmatpush1.bf16.msra.mxu0 %v909
    %1293 = vmatprep.subr.bf16.mxu0 %v914
    %1294 = vmatpush1.bf16.msra.mxu0 %v913
    %1295 = vmatprep.subr.bf16.mxu0 %v918
    %1296 = vmatpush1.bf16.msra.mxu0 %v917
    %1297 = vmatprep.subr.bf16.mxu0 %v922
    %1298 = vmatpush1.bf16.msra.mxu0 %v921
    %1299 = vmatprep.subr.bf16.mxu0 %v926
    %1300 = vmatpush1.bf16.msra.mxu0 %v925
    %1301 = vmatprep.subr.bf16.mxu0 %v930
    %1302 = vmatpush1.bf16.msra.mxu0 %v929
    %1303 = vmatprep.subr.bf16.mxu0 %v934
    %1304 = vmatpush1.bf16.msra.mxu0 %v933
    %1305 = vmatprep.subr.bf16.mxu0 %v938
    %1306 = vmatpush1.bf16.msra.mxu0 %v937
    %1307 = vmatprep.subr.bf16.mxu0 %v942
    %1308 = vmatpush1.bf16.msra.mxu0 %v941
    %1309 = vmatprep.subr.bf16.mxu0 %v946
    %1310 = vmatpush1.bf16.msra.mxu0 %v945
    %1311 = vmatprep.subr.bf16.mxu0 %v950
    %1312 = vmatpush1.bf16.msra.mxu0 %v949
    %1313 = vmatprep.subr.bf16.mxu0 %v954
    %1314 = vmatpush1.bf16.msra.mxu0 %v953
    %1315 = vmatprep.subr.bf16.mxu0 %v958
    %1316 = vmatpush1.bf16.msra.mxu0 %v957
    %1317 = vmatprep.subr.bf16.mxu0 %v962
    %1318 = vmatpush1.bf16.msra.mxu0 %v961
    %1319 = vmatprep.subr.bf16.mxu0 %v966
    %1320 = vmatpush1.bf16.msra.mxu0 %v965
    %1321 = vmatprep.mubr.bf16.mxu0 %v92
    %1322 = vmatmul.mubr.bf16.gmra.mrb[0].mxu0 %v91
    %v1323 = vpop.f32.mrb[0].mxu0
    %v1324 = vadd.f32 %v312, %v1323
    %v1325 = vpop.f32.mrb[0].mxu0
    %v1326 = vadd.f32 %v316, %v1325
    %v1327 = vpop.f32.mrb[0].mxu0
    %v1328 = vadd.f32 %v312, %v1327
    %v1329 = vpop.f32.mrb[0].mxu0
    %v1330 = vadd.f32 %v316, %v1329
    %1331 = vmatprep.mubr.bf16.mxu0 %v98
    %1332 = vmatmul.mubr.bf16.gmra.mrb[0].mxu0 %v97
    %v1333 = vpop.f32.mrb[0].mxu0
    %v1334 = vadd.f32 %v312, %v1333
    %v1335 = vpop.f32.mrb[0].mxu0
    %v1336 = vadd.f32 %v316, %v1335
    %v1337 = vpop.f32.mrb[0].mxu0
    %v1338 = vadd.f32 %v312, %v1337
    %v1339 = vpop.f32.mrb[0].mxu0
    %v1340 = vadd.f32 %v316, %v1339
    %1341 = vmatprep.mubr.bf16.mxu0 %v104
    %1342 = vmatmul.mubr.bf16.gmra.mrb[0].mxu0 %v103
    %v1343 = vpop.f32.mrb[0].mxu0
    %v1344 = vadd.f32 %v312, %v1343
    %v1345 = vpop.f32.mrb[0].mxu0
    %v1346 = vadd.f32 %v316, %v1345
    %v1347 = vpop.f32.mrb[0].mxu0
    %v1348 = vadd.f32 %v312, %v1347
    %v1349 = vpop.f32.mrb[0].mxu0
    %v1350 = vadd.f32 %v316, %v1349
    %1351 = vmatprep.mubr.bf16.mxu0 %v110
    %1352 = vmatmul.mubr.bf16.gmra.mrb[0].mxu0 %v109
    %v1353 = vpop.f32.mrb[0].mxu0
    %v1354 = vadd.f32 %v312, %v1353
    %v1355 = vpop.f32.mrb[0].mxu0
    %v1356 = vadd.f32 %v316, %v1355
    %v1357 = vpop.f32.mrb[0].mxu0
    %v1358 = vadd.f32 %v312, %v1357
    %v1359 = vpop.f32.mrb[0].mxu0
    %v1360 = vadd.f32 %v316, %v1359
    %1361 = vdwg.mxu0
    %1362 = vmatprep.subr.bf16.mxu0 %v970
    %1363 = vmatpush1.bf16.msra.mxu0 %v969
    %1364 = vmatprep.subr.bf16.mxu0 %v974
    %1365 = vmatpush1.bf16.msra.mxu0 %v973
    %1366 = vmatprep.subr.bf16.mxu0 %v978
    %1367 = vmatpush1.bf16.msra.mxu0 %v977
    %1368 = vmatprep.subr.bf16.mxu0 %v982
    %1369 = vmatpush1.bf16.msra.mxu0 %v981
    %1370 = vmatprep.subr.bf16.mxu0 %v986
    %1371 = vmatpush1.bf16.msra.mxu0 %v985
    %1372 = vmatprep.subr.bf16.mxu0 %v990
    %1373 = vmatpush1.bf16.msra.mxu0 %v989
    %1374 = vmatprep.subr.bf16.mxu0 %v994
    %1375 = vmatpush1.bf16.msra.mxu0 %v993
    %1376 = vmatprep.subr.bf16.mxu0 %v998
    %1377 = vmatpush1.bf16.msra.mxu0 %v997
    %1378 = vmatprep.subr.bf16.mxu0 %v1002
    %1379 = vmatpush1.bf16.msra.mxu0 %v1001
    %1380 = vmatprep.subr.bf16.mxu0 %v1006
    %1381 = vmatpush1.bf16.msra.mxu0 %v1005
    %1382 = vmatprep.subr.bf16.mxu0 %v1010
    %1383 = vmatpush1.bf16.msra.mxu0 %v1009
    %1384 = vmatprep.subr.bf16.mxu0 %v1014
    %1385 = vmatpush1.bf16.msra.mxu0 %v1013
    %1386 = vmatprep.subr.bf16.mxu0 %v1018
    %1387 = vmatpush1.bf16.msra.mxu0 %v1017
    %1388 = vmatprep.subr.bf16.mxu0 %v1022
    %1389 = vmatpush1.bf16.msra.mxu0 %v1021
    %1390 = vmatprep.subr.bf16.mxu0 %v1026
    %1391 = vmatpush1.bf16.msra.mxu0 %v1025
    %1392 = vmatprep.subr.bf16.mxu0 %v1030
    %1393 = vmatpush1.bf16.msra.mxu0 %v1029
    %1394 = vmatprep.mubr.bf16.mxu0 %v94
    %1395 = vmatmul.mubr.bf16.gmra.mrb[0].mxu0 %v93
    %v1396 = vpop.f32.mrb[0].mxu0
    %v1397 = vadd.f32 %v1324, %v1396
    %v1398 = vpop.f32.mrb[0].mxu0
    %v1399 = vadd.f32 %v1326, %v1398
    %v1400 = vpop.f32.mrb[0].mxu0
    %v1401 = vadd.f32 %v1328, %v1400
    %v1402 = vpop.f32.mrb[0].mxu0
    %v1403 = vadd.f32 %v1330, %v1402
    %1404 = vmatprep.mubr.bf16.mxu0 %v100
    %1405 = vmatmul.mubr.bf16.gmra.mrb[0].mxu0 %v99
    %v1406 = vpop.f32.mrb[0].mxu0
    %v1407 = vadd.f32 %v1334, %v1406
    %v1408 = vpop.f32.mrb[0].mxu0
    %v1409 = vadd.f32 %v1336, %v1408
    %v1410 = vpop.f32.mrb[0].mxu0
    %v1411 = vadd.f32 %v1338, %v1410
    %v1412 = vpop.f32.mrb[0].mxu0
    %v1413 = vadd.f32 %v1340, %v1412
    %1414 = vmatprep.mubr.bf16.mxu0 %v106
    %1415 = vmatmul.mubr.bf16.gmra.mrb[0].mxu0 %v105
    %v1416 = vpop.f32.mrb[0].mxu0
    %v1417 = vadd.f32 %v1344, %v1416
    %v1418 = vpop.f32.mrb[0].mxu0
    %v1419 = vadd.f32 %v1346, %v1418
    %v1420 = vpop.f32.mrb[0].mxu0
    %v1421 = vadd.f32 %v1348, %v1420
    %v1422 = vpop.f32.mrb[0].mxu0
    %v1423 = vadd.f32 %v1350, %v1422
    %1424 = vmatprep.mubr.bf16.mxu0 %v112
    %1425 = vmatmul.mubr.bf16.gmra.mrb[0].mxu0 %v111
    %v1426 = vpop.f32.mrb[0].mxu0
    %v1427 = vadd.f32 %v1354, %v1426
    %v1428 = vpop.f32.mrb[0].mxu0
    %v1429 = vadd.f32 %v1356, %v1428
    %v1430 = vpop.f32.mrb[0].mxu0
    %v1431 = vadd.f32 %v1358, %v1430
    %v1432 = vpop.f32.mrb[0].mxu0
    %v1433 = vadd.f32 %v1360, %v1432
    %1434 = vdwg.mxu0
    %1435 = vmatprep.subr.bf16.mxu0 %v1034
    %1436 = vmatpush1.bf16.msra.mxu0 %v1033
    %1437 = vmatprep.subr.bf16.mxu0 %v1038
    %1438 = vmatpush1.bf16.msra.mxu0 %v1037
    %1439 = vmatprep.subr.bf16.mxu0 %v1042
    %1440 = vmatpush1.bf16.msra.mxu0 %v1041
    %1441 = vmatprep.subr.bf16.mxu0 %v1046
    %1442 = vmatpush1.bf16.msra.mxu0 %v1045
    %1443 = vmatprep.subr.bf16.mxu0 %v1050
    %1444 = vmatpush1.bf16.msra.mxu0 %v1049
    %1445 = vmatprep.subr.bf16.mxu0 %v1054
    %1446 = vmatpush1.bf16.msra.mxu0 %v1053
    %1447 = vmatprep.subr.bf16.mxu0 %v1058
    %1448 = vmatpush1.bf16.msra.mxu0 %v1057
    %1449 = vmatprep.subr.bf16.mxu0 %v1062
    %1450 = vmatpush1.bf16.msra.mxu0 %v1061
    %1451 = vmatprep.subr.bf16.mxu0 %v1066
    %1452 = vmatpush1.bf16.msra.mxu0 %v1065
    %1453 = vmatprep.subr.bf16.mxu0 %v1070
    %1454 = vmatpush1.bf16.msra.mxu0 %v1069
    %1455 = vmatprep.subr.bf16.mxu0 %v1074
    %1456 = vmatpush1.bf16.msra.mxu0 %v1073
    %1457 = vmatprep.subr.bf16.mxu0 %v1078
    %1458 = vmatpush1.bf16.msra.mxu0 %v1077
    %1459 = vmatprep.subr.bf16.mxu0 %v1082
    %1460 = vmatpush1.bf16.msra.mxu0 %v1081
    %1461 = vmatprep.subr.bf16.mxu0 %v1086
    %1462 = vmatpush1.bf16.msra.mxu0 %v1085
    %1463 = vmatprep.subr.bf16.mxu0 %v1090
    %1464 = vmatpush1.bf16.msra.mxu0 %v1089
    %1465 = vmatprep.subr.bf16.mxu0 %v1094
    %1466 = vmatpush1.bf16.msra.mxu0 %v1093
    %1467 = vmatprep.mubr.bf16.mxu0 %v96
    %1468 = vmatmul.mubr.bf16.gmra.mrb[0].mxu0 %v95
    %v1469 = vpop.f32.mrb[0].mxu0
    %v1470 = vadd.f32 %v1397, %v1469
    %v1471 = vpop.f32.mrb[0].mxu0
    %v1472 = vadd.f32 %v1399, %v1471
    %v1473 = vpop.f32.mrb[0].mxu0
    %v1474 = vadd.f32 %v1401, %v1473
    %v1475 = vpop.f32.mrb[0].mxu0
    %v1476 = vadd.f32 %v1403, %v1475
    %1477 = vmatprep.mubr.bf16.mxu0 %v102
    %1478 = vmatmul.mubr.bf16.gmra.mrb[0].mxu0 %v101
    %v1479 = vpop.f32.mrb[0].mxu0
    %v1480 = vadd.f32 %v1407, %v1479
    %v1481 = vpop.f32.mrb[0].mxu0
    %v1482 = vadd.f32 %v1409, %v1481
    %v1483 = vpop.f32.mrb[0].mxu0
    %v1484 = vadd.f32 %v1411, %v1483
    %v1485 = vpop.f32.mrb[0].mxu0
    %v1486 = vadd.f32 %v1413, %v1485
    %1487 = vmatprep.mubr.bf16.mxu0 %v108
    %1488 = vmatmul.mubr.bf16.gmra.mrb[0].mxu0 %v107
    %v1489 = vpop.f32.mrb[0].mxu0
    %v1490 = vadd.f32 %v1417, %v1489
    %v1491 = vpop.f32.mrb[0].mxu0
    %v1492 = vadd.f32 %v1419, %v1491
    %v1493 = vpop.f32.mrb[0].mxu0
    %v1494 = vadd.f32 %v1421, %v1493
    %v1495 = vpop.f32.mrb[0].mxu0
    %v1496 = vadd.f32 %v1423, %v1495
    %1497 = vmatprep.mubr.bf16.mxu0 %v114
    %1498 = vmatmul.mubr.bf16.gmra.mrb[0].mxu0 %v113
    %v1499 = vpop.f32.mrb[0].mxu0
    %v1500 = vadd.f32 %v1427, %v1499
    %v1501 = vpop.f32.mrb[0].mxu0
    %v1502 = vadd.f32 %v1429, %v1501
    %v1503 = vpop.f32.mrb[0].mxu0
    %v1504 = vadd.f32 %v1431, %v1503
    %v1505 = vpop.f32.mrb[0].mxu0
    %v1506 = vadd.f32 %v1433, %v1505
    %1507 = vdwg.mxu0
    %1508 = vmatprep.subr.bf16.mxu0 %v908
    %1509 = vmatpush1.bf16.msra.mxu0 %v907
    %1510 = vmatprep.subr.bf16.mxu0 %v912
    %1511 = vmatpush1.bf16.msra.mxu0 %v911
    %1512 = vmatprep.subr.bf16.mxu0 %v916
    %1513 = vmatpush1.bf16.msra.mxu0 %v915
    %1514 = vmatprep.subr.bf16.mxu0 %v920
    %1515 = vmatpush1.bf16.msra.mxu0 %v919
    %1516 = vmatprep.subr.bf16.mxu0 %v924
    %1517 = vmatpush1.bf16.msra.mxu0 %v923
    %1518 = vmatprep.subr.bf16.mxu0 %v928
    %1519 = vmatpush1.bf16.msra.mxu0 %v927
    %1520 = vmatprep.subr.bf16.mxu0 %v932
    %1521 = vmatpush1.bf16.msra.mxu0 %v931
    %1522 = vmatprep.subr.bf16.mxu0 %v936
    %1523 = vmatpush1.bf16.msra.mxu0 %v935
    %1524 = vmatprep.subr.bf16.mxu0 %v940
    %1525 = vmatpush1.bf16.msra.mxu0 %v939
    %1526 = vmatprep.subr.bf16.mxu0 %v944
    %1527 = vmatpush1.bf16.msra.mxu0 %v943
    %1528 = vmatprep.subr.bf16.mxu0 %v948
    %1529 = vmatpush1.bf16.msra.mxu0 %v947
    %1530 = vmatprep.subr.bf16.mxu0 %v952
    %1531 = vmatpush1.bf16.msra.mxu0 %v951
    %1532 = vmatprep.subr.bf16.mxu0 %v956
    %1533 = vmatpush1.bf16.msra.mxu0 %v955
    %1534 = vmatprep.subr.bf16.mxu0 %v960
    %1535 = vmatpush1.bf16.msra.mxu0 %v959
    %1536 = vmatprep.subr.bf16.mxu0 %v964
    %1537 = vmatpush1.bf16.msra.mxu0 %v963
    %1538 = vmatprep.subr.bf16.mxu0 %v968
    %1539 = vmatpush1.bf16.msra.mxu0 %v967
    %1540 = vmatprep.mubr.bf16.mxu0 %v92
    %1541 = vmatmul.mubr.bf16.gmra.mrb[0].mxu0 %v91
    %v1542 = vpop.f32.mrb[0].mxu0
    %v1543 = vadd.f32 %v320, %v1542
    %v1544 = vpop.f32.mrb[0].mxu0
    %v1545 = vadd.f32 %v324, %v1544
    %v1546 = vpop.f32.mrb[0].mxu0
    %v1547 = vadd.f32 %v320, %v1546
    %v1548 = vpop.f32.mrb[0].mxu0
    %v1549 = vadd.f32 %v324, %v1548
    %1550 = vmatprep.mubr.bf16.mxu0 %v98
    %1551 = vmatmul.mubr.bf16.gmra.mrb[0].mxu0 %v97
    %v1552 = vpop.f32.mrb[0].mxu0
    %v1553 = vadd.f32 %v320, %v1552
    %v1554 = vpop.f32.mrb[0].mxu0
    %v1555 = vadd.f32 %v324, %v1554
    %v1556 = vpop.f32.mrb[0].mxu0
    %v1557 = vadd.f32 %v320, %v1556
    %v1558 = vpop.f32.mrb[0].mxu0
    %v1559 = vadd.f32 %v324, %v1558
    %1560 = vmatprep.mubr.bf16.mxu0 %v104
    %1561 = vmatmul.mubr.bf16.gmra.mrb[0].mxu0 %v103
    %v1562 = vpop.f32.mrb[0].mxu0
    %v1563 = vadd.f32 %v320, %v1562
    %v1564 = vpop.f32.mrb[0].mxu0
    %v1565 = vadd.f32 %v324, %v1564
    %v1566 = vpop.f32.mrb[0].mxu0
    %v1567 = vadd.f32 %v320, %v1566
    %v1568 = vpop.f32.mrb[0].mxu0
    %v1569 = vadd.f32 %v324, %v1568
    %1570 = vmatprep.mubr.bf16.mxu0 %v110
    %1571 = vmatmul.mubr.bf16.gmra.mrb[0].mxu0 %v109
    %v1572 = vpop.f32.mrb[0].mxu0
    %v1573 = vadd.f32 %v320, %v1572
    %v1574 = vpop.f32.mrb[0].mxu0
    %v1575 = vadd.f32 %v324, %v1574
    %v1576 = vpop.f32.mrb[0].mxu0
    %v1577 = vadd.f32 %v320, %v1576
    %v1578 = vpop.f32.mrb[0].mxu0
    %v1579 = vadd.f32 %v324, %v1578
    %1580 = vdwg.mxu0
    %1581 = vmatprep.subr.bf16.mxu0 %v972
    %1582 = vmatpush1.bf16.msra.mxu0 %v971
    %1583 = vmatprep.subr.bf16.mxu0 %v976
    %1584 = vmatpush1.bf16.msra.mxu0 %v975
    %1585 = vmatprep.subr.bf16.mxu0 %v980
    %1586 = vmatpush1.bf16.msra.mxu0 %v979
    %1587 = vmatprep.subr.bf16.mxu0 %v984
    %1588 = vmatpush1.bf16.msra.mxu0 %v983
    %1589 = vmatprep.subr.bf16.mxu0 %v988
    %1590 = vmatpush1.bf16.msra.mxu0 %v987
    %1591 = vmatprep.subr.bf16.mxu0 %v992
    %1592 = vmatpush1.bf16.msra.mxu0 %v991
    %1593 = vmatprep.subr.bf16.mxu0 %v996
    %1594 = vmatpush1.bf16.msra.mxu0 %v995
    %1595 = vmatprep.subr.bf16.mxu0 %v1000
    %1596 = vmatpush1.bf16.msra.mxu0 %v999
    %1597 = vmatprep.subr.bf16.mxu0 %v1004
    %1598 = vmatpush1.bf16.msra.mxu0 %v1003
    %1599 = vmatprep.subr.bf16.mxu0 %v1008
    %1600 = vmatpush1.bf16.msra.mxu0 %v1007
    %1601 = vmatprep.subr.bf16.mxu0 %v1012
    %1602 = vmatpush1.bf16.msra.mxu0 %v1011
    %1603 = vmatprep.subr.bf16.mxu0 %v1016
    %1604 = vmatpush1.bf16.msra.mxu0 %v1015
    %1605 = vmatprep.subr.bf16.mxu0 %v1020
    %1606 = vmatpush1.bf16.msra.mxu0 %v1019
    %1607 = vmatprep.subr.bf16.mxu0 %v1024
    %1608 = vmatpush1.bf16.msra.mxu0 %v1023
    %1609 = vmatprep.subr.bf16.mxu0 %v1028
    %1610 = vmatpush1.bf16.msra.mxu0 %v1027
    %1611 = vmatprep.subr.bf16.mxu0 %v1032
    %1612 = vmatpush1.bf16.msra.mxu0 %v1031
    %1613 = vmatprep.mubr.bf16.mxu0 %v94
    %1614 = vmatmul.mubr.bf16.gmra.mrb[0].mxu0 %v93
    %v1615 = vpop.f32.mrb[0].mxu0
    %v1616 = vadd.f32 %v1543, %v1615
    %v1617 = vpop.f32.mrb[0].mxu0
    %v1618 = vadd.f32 %v1545, %v1617
    %v1619 = vpop.f32.mrb[0].mxu0
    %v1620 = vadd.f32 %v1547, %v1619
    %v1621 = vpop.f32.mrb[0].mxu0
    %v1622 = vadd.f32 %v1549, %v1621
    %1623 = vmatprep.mubr.bf16.mxu0 %v100
    %1624 = vmatmul.mubr.bf16.gmra.mrb[0].mxu0 %v99
    %v1625 = vpop.f32.mrb[0].mxu0
    %v1626 = vadd.f32 %v1553, %v1625
    %v1627 = vpop.f32.mrb[0].mxu0
    %v1628 = vadd.f32 %v1555, %v1627
    %v1629 = vpop.f32.mrb[0].mxu0
    %v1630 = vadd.f32 %v1557, %v1629
    %v1631 = vpop.f32.mrb[0].mxu0
    %v1632 = vadd.f32 %v1559, %v1631
    %1633 = vmatprep.mubr.bf16.mxu0 %v106
    %1634 = vmatmul.mubr.bf16.gmra.mrb[0].mxu0 %v105
    %v1635 = vpop.f32.mrb[0].mxu0
    %v1636 = vadd.f32 %v1563, %v1635
    %v1637 = vpop.f32.mrb[0].mxu0
    %v1638 = vadd.f32 %v1565, %v1637
    %v1639 = vpop.f32.mrb[0].mxu0
    %v1640 = vadd.f32 %v1567, %v1639
    %v1641 = vpop.f32.mrb[0].mxu0
    %v1642 = vadd.f32 %v1569, %v1641
    %1643 = vmatprep.mubr.bf16.mxu0 %v112
    %1644 = vmatmul.mubr.bf16.gmra.mrb[0].mxu0 %v111
    %v1645 = vpop.f32.mrb[0].mxu0
    %v1646 = vadd.f32 %v1573, %v1645
    %v1647 = vpop.f32.mrb[0].mxu0
    %v1648 = vadd.f32 %v1575, %v1647
    %v1649 = vpop.f32.mrb[0].mxu0
    %v1650 = vadd.f32 %v1577, %v1649
    %v1651 = vpop.f32.mrb[0].mxu0
    %v1652 = vadd.f32 %v1579, %v1651
    %1653 = vdwg.mxu0
    %1654 = vmatprep.subr.bf16.mxu0 %v1036
    %1655 = vmatpush1.bf16.msra.mxu0 %v1035
    %1656 = vmatprep.subr.bf16.mxu0 %v1040
    %1657 = vmatpush1.bf16.msra.mxu0 %v1039
    %1658 = vmatprep.subr.bf16.mxu0 %v1044
    %1659 = vmatpush1.bf16.msra.mxu0 %v1043
    %1660 = vmatprep.subr.bf16.mxu0 %v1048
    %1661 = vmatpush1.bf16.msra.mxu0 %v1047
    %1662 = vmatprep.subr.bf16.mxu0 %v1052
    %1663 = vmatpush1.bf16.msra.mxu0 %v1051
    %1664 = vmatprep.subr.bf16.mxu0 %v1056
    %1665 = vmatpush1.bf16.msra.mxu0 %v1055
    %1666 = vmatprep.subr.bf16.mxu0 %v1060
    %1667 = vmatpush1.bf16.msra.mxu0 %v1059
    %1668 = vmatprep.subr.bf16.mxu0 %v1064
    %1669 = vmatpush1.bf16.msra.mxu0 %v1063
    %1670 = vmatprep.subr.bf16.mxu0 %v1068
    %1671 = vmatpush1.bf16.msra.mxu0 %v1067
    %1672 = vmatprep.subr.bf16.mxu0 %v1072
    %1673 = vmatpush1.bf16.msra.mxu0 %v1071
    %1674 = vmatprep.subr.bf16.mxu0 %v1076
    %1675 = vmatpush1.bf16.msra.mxu0 %v1075
    %1676 = vmatprep.subr.bf16.mxu0 %v1080
    %1677 = vmatpush1.bf16.msra.mxu0 %v1079
    %1678 = vmatprep.subr.bf16.mxu0 %v1084
    %1679 = vmatpush1.bf16.msra.mxu0 %v1083
    %1680 = vmatprep.subr.bf16.mxu0 %v1088
    %1681 = vmatpush1.bf16.msra.mxu0 %v1087
    %1682 = vmatprep.subr.bf16.mxu0 %v1092
    %1683 = vmatpush1.bf16.msra.mxu0 %v1091
    %1684 = vmatprep.subr.bf16.mxu0 %v1096
    %1685 = vmatpush1.bf16.msra.mxu0 %v1095
    %1686 = vmatprep.mubr.bf16.mxu0 %v96
    %1687 = vmatmul.mubr.bf16.gmra.mrb[0].mxu0 %v95
    %v1688 = vpop.f32.mrb[0].mxu0
    %v1689 = vadd.f32 %v1616, %v1688
    %v1690 = vpop.f32.mrb[0].mxu0
    %v1691 = vadd.f32 %v1618, %v1690
    %v1692 = vpop.f32.mrb[0].mxu0
    %v1693 = vadd.f32 %v1620, %v1692
    %v1694 = vpop.f32.mrb[0].mxu0
    %v1695 = vadd.f32 %v1622, %v1694
    %1696 = vmatprep.mubr.bf16.mxu0 %v102
    %1697 = vmatmul.mubr.bf16.gmra.mrb[0].mxu0 %v101
    %v1698 = vpop.f32.mrb[0].mxu0
    %v1699 = vadd.f32 %v1626, %v1698
    %v1700 = vpop.f32.mrb[0].mxu0
    %v1701 = vadd.f32 %v1628, %v1700
    %v1702 = vpop.f32.mrb[0].mxu0
    %v1703 = vadd.f32 %v1630, %v1702
    %v1704 = vpop.f32.mrb[0].mxu0
    %v1705 = vadd.f32 %v1632, %v1704
    %1706 = vmatprep.mubr.bf16.mxu0 %v108
    %1707 = vmatmul.mubr.bf16.gmra.mrb[0].mxu0 %v107
    %v1708 = vpop.f32.mrb[0].mxu0
    %v1709 = vadd.f32 %v1636, %v1708
    %v1710 = vpop.f32.mrb[0].mxu0
    %v1711 = vadd.f32 %v1638, %v1710
    %v1712 = vpop.f32.mrb[0].mxu0
    %v1713 = vadd.f32 %v1640, %v1712
    %v1714 = vpop.f32.mrb[0].mxu0
    %v1715 = vadd.f32 %v1642, %v1714
    %1716 = vmatprep.mubr.bf16.mxu0 %v114
    %1717 = vmatmul.mubr.bf16.gmra.mrb[0].mxu0 %v113
    %v1718 = vpop.f32.mrb[0].mxu0
    %v1719 = vadd.f32 %v1646, %v1718
    %v1720 = vpop.f32.mrb[0].mxu0
    %v1721 = vadd.f32 %v1648, %v1720
    %v1722 = vpop.f32.mrb[0].mxu0
    %v1723 = vadd.f32 %v1650, %v1722
    %v1724 = vpop.f32.mrb[0].mxu0
    %v1725 = vadd.f32 %v1652, %v1724
    %1726 = vdwg.mxu0
    %1727 = vst [vmem:[#allocation7] sm:$0xff] %v1470
    %1728 = vst [vmem:[#allocation7 + $0x8] sm:$0xff] %v1472
    %1729 = vst [vmem:[#allocation7 + $0x10] sm:$0xff] %v1689
    %1730 = vst [vmem:[#allocation7 + $0x18] sm:$0xff] %v1691
    %1731 = vst [vmem:[#allocation7 + $0x20] sm:$0xff] %v1474
    %1732 = vst [vmem:[#allocation7 + $0x28] sm:$0xff] %v1476
    %1733 = vst [vmem:[#allocation7 + $0x30] sm:$0xff] %v1693
    %1734 = vst [vmem:[#allocation7 + $0x38] sm:$0xff] %v1695
    %1735 = vst [vmem:[#allocation7 + $0x40] sm:$0xff] %v1480
    %1736 = vst [vmem:[#allocation7 + $0x48] sm:$0xff] %v1482
    %1737 = vst [vmem:[#allocation7 + $0x50] sm:$0xff] %v1699
    %1738 = vst [vmem:[#allocation7 + $0x58] sm:$0xff] %v1701
    %1739 = vst [vmem:[#allocation7 + $0x60] sm:$0xff] %v1484
    %1740 = vst [vmem:[#allocation7 + $0x68] sm:$0xff] %v1486
    %1741 = vst [vmem:[#allocation7 + $0x70] sm:$0xff] %v1703
    %1742 = vst [vmem:[#allocation7 + $0x78] sm:$0xff] %v1705
    %1743 = vst [vmem:[#allocation7 + $0x80] sm:$0xff] %v1490
    %1744 = vst [vmem:[#allocation7 + $0x88] sm:$0xff] %v1492
    %1745 = vst [vmem:[#allocation7 + $0x90] sm:$0xff] %v1709
    %1746 = vst [vmem:[#allocation7 + $0x98] sm:$0xff] %v1711
    %1747 = vst [vmem:[#allocation7 + $0xa0] sm:$0xff] %v1494
    %1748 = vst [vmem:[#allocation7 + $0xa8] sm:$0xff] %v1496
    %1749 = vst [vmem:[#allocation7 + $0xb0] sm:$0xff] %v1713
    %1750 = vst [vmem:[#allocation7 + $0xb8] sm:$0xff] %v1715
    %1751 = vst [vmem:[#allocation7 + $0xc0] sm:$0xff] %v1500
    %1752 = vst [vmem:[#allocation7 + $0xc8] sm:$0xff] %v1502
    %1753 = vst [vmem:[#allocation7 + $0xd0] sm:$0xff] %v1719
    %1754 = vst [vmem:[#allocation7 + $0xd8] sm:$0xff] %v1721
    %1755 = vst [vmem:[#allocation7 + $0xe0] sm:$0xff] %v1504
    %1756 = vst [vmem:[#allocation7 + $0xe8] sm:$0xff] %v1506
    %1757 = vst [vmem:[#allocation7 + $0xf0] sm:$0xff] %v1723
    %1758 = vst [vmem:[#allocation7 + $0xf8] sm:$0xff] %v1725
    // Predicated region
    $region22: #{tpu_custom_call.1} parent=1 // pred_check
      _
    $region23: #{tpu_custom_call.1} parent=1 // pred_check_branch
      %1760 = sbr.rel (0) target = $region25
    $region24: #{tpu_custom_call.1} parent=1 // pred_region
      %s1762 = ssub.s32 4096, 4096
      %1763 = vsyncadd [#allocation4], %s1762
      %s1764 = sshll.u32 [#allocation7], 4
      %s1765 = int_to_ptr.vmem [resolvable:$true] %s1764
      %1770 = dma.vmem_to_hbm [thread:$0]  %s1765, 4096, %s3, [#allocation4], 512, 512, 32
    $region25: #{tpu_custom_call.1} parent=1 // pred_fallthru
      _
    // Predicated region
    $region26: #{tpu_custom_call.1} parent=1 // pred_check
      _
    $region27: #{tpu_custom_call.1} parent=1 // pred_check_branch
      %1772 = sbr.rel (0) target = $region29
    $region28: #{tpu_custom_call.1} parent=1 // pred_region
      %1773 = dma.done [#allocation4], 4096
    $region29: #{tpu_custom_call.1} parent=1 // pred_fallthru
      _
    %1774 = vsyncpa [#allocation3], 1
    %1775 = vsyncpa [#allocation6], 1
    %1776 = vsyncpa [#allocation4], 1

</llo_original>
